<compile_context>
chip_gen: v7x
topology: tpu7x:2x2x1
jax: 0.10.0
libtpu: 0.0.40
codegen_flags: <defaults>
</compile_context>

<pallas_src>
import jax
import jax.numpy as jnp
import numpy as np
from jax import lax
from jax.experimental import pallas as pl
from jax.experimental.pallas import tpu as pltpu

OUT_W = 128      # lane-dense packed output row width
A_COL = 8        # column offset where the attention weights start


# ----------------------------------------------------------------------------
# Fused kernel: one bag per grid step.
#   x_ref  : (1, N, C, HW)   bag of N instances, channels-major, HW on lanes
#   w0/b0  : synthetic backbone stem (C,F) / (1,F)
#   wv/bv  : attention V (F,HID) / (1,HID)
#   ww/bw  : attention w (HID,1) / (1,1)
#   wh/bh  : merged [reg | cls] head, zero-padded to OUT_W: (2F,OUT_W)/(1,OUT_W)
#   out    : (1, 1, OUT_W)  packed row: col0 = scaled reg, 1..n_cls = cls,
#                                        A_COL..A_COL+N-1 = attention weights
#   feats  : VMEM scratch (N, F)
# ----------------------------------------------------------------------------
def _fused_kernel(x_ref, w0_ref, b0_ref, wv_ref, bv_ref, ww_ref, bw_ref,
                  wh_ref, bh_ref, out_ref, feats_ref):
    N = feats_ref.shape[0]

    w0 = w0_ref[...]                                    # (C, F)
    b0 = b0_ref[...]                                    # (1, F)

    # ---- backbone stem (1x1 conv + ReLU) + global average pool -------------
    # Contract on C directly (both operands contract dim 0) so the input tile
    # stays lane-dense; no host-side NCHW->NHWC transpose needed.
    for n in range(N):                                  # N is small & static
        xi = x_ref[0, n]                                # (C, HW)
        h = lax.dot_general(xi, w0, (((0,), (0,)), ((), ())),
                            preferred_element_type=jnp.float32)   # (HW, F)
        h = jnp.maximum(h + b0, 0.0)
        feats_ref[pl.ds(n, 1), :] = jnp.mean(h, axis=0, keepdims=True)

    f = feats_ref[...]                                  # (N, F)

    # ---- MIL attention: softmax(tanh(f Wv + bv) Ww + bw) over instances ----
    hh = jnp.tanh(jnp.dot(f, wv_ref[...], preferred_element_type=jnp.float32)
                  + bv_ref[...])                        # (N, HID)
    logits = (jnp.dot(hh, ww_ref[...], preferred_element_type=jnp.float32)
              + bw_ref[...])                            # (N, 1)
    logits = logits - jnp.max(logits, axis=0, keepdims=True)
    e = jnp.exp(logits)
    a = e * pl.reciprocal(jnp.sum(e, axis=0, keepdims=True), approx=True)

    # ---- concat-pool over instances: [attention-weighted sum, max] ---------
    pooled_att = jnp.sum(a * f, axis=0, keepdims=True)  # (1, F)
    pooled_max = jnp.max(f, axis=0, keepdims=True)      # (1, F)
    xcat = jnp.concatenate([pooled_att, pooled_max], axis=-1)   # (1, 2F)

    # ---- merged reg+cls head: one lane-dense matmul -------------------------
    head = (jnp.dot(xcat, wh_ref[...], preferred_element_type=jnp.float32)
            + bh_ref[...])                              # (1, OUT_W)
    col = lax.broadcasted_iota(jnp.int32, (1, OUT_W), 1)
    reg_scaled = 7.0 * jax.nn.sigmoid(head) - 1.0       # scale_op on column 0
    packed = jnp.where(col == 0, reg_scaled, head)

    # scatter attention weights a[k] into column A_COL + k via mask + reduce
    # (avoids an in-kernel (N,1)->(1,N) relayout).
    k_ids = lax.broadcasted_iota(jnp.int32, (N, OUT_W), 0)
    c_ids = lax.broadcasted_iota(jnp.int32, (N, OUT_W), 1)
    place = (c_ids == k_ids + A_COL).astype(jnp.float32)      # (N, OUT_W)
    packed = packed + jnp.sum(a * place, axis=0, keepdims=True)

    out_ref[0] = packed                                 # single (1,128) store


# ----------------------------------------------------------------------------
# Forward wrapper (all hot math inside one pallas_call)
# ----------------------------------------------------------------------------
def attention_model_forward(x, params):
    """Returns (reg_pred (B,), cls_pred (B, n_cls), A (B, N, 1))."""
    B, N, C, H, W = x.shape
    HW = H * W
    x_r = x.reshape(B, N, C, HW)             # pure reshape, no transpose pass

    w0, b0 = params["w0"], params["b0"]
    wv, bv = params["wv"], params["bv"]
    ww, bw = params["ww"], params["bw"]
    F = w0.shape[1]
    HID = wv.shape[1]
    n_cls = params["wc"].shape[1]
    n_head = 1 + n_cls
    assert n_head <= A_COL and A_COL + N <= OUT_W

    # merge reg + cls heads into one matmul, zero-padded to lane-dense OUT_W
    wh = jnp.concatenate([params["wr"], params["wc"]], axis=1)   # (2F, n_head)
    bh = jnp.concatenate([params["br"], params["bc"]], axis=1)   # (1, n_head)
    wh = jnp.pad(wh, ((0, 0), (0, OUT_W - n_head)))
    bh = jnp.pad(bh, ((0, 0), (0, OUT_W - n_head)))

    out = pl.pallas_call(
        _fused_kernel,
        out_shape=jax.ShapeDtypeStruct((B, 1, OUT_W), jnp.float32),
        grid_spec=pltpu.PrefetchScalarGridSpec(
            num_scalar_prefetch=0,
            grid=(B,),
            in_specs=[
                pl.BlockSpec((1, N, C, HW), lambda b: (b, 0, 0, 0)),
                pl.BlockSpec((C, F), lambda b: (0, 0)),
                pl.BlockSpec((1, F), lambda b: (0, 0)),
                pl.BlockSpec((F, HID), lambda b: (0, 0)),
                pl.BlockSpec((1, HID), lambda b: (0, 0)),
                pl.BlockSpec((HID, 1), lambda b: (0, 0)),
                pl.BlockSpec((1, 1), lambda b: (0, 0)),
                pl.BlockSpec((2 * F, OUT_W), lambda b: (0, 0)),
                pl.BlockSpec((1, OUT_W), lambda b: (0, 0)),
            ],
            out_specs=pl.BlockSpec((1, 1, OUT_W), lambda b: (b, 0, 0)),
            scratch_shapes=[pltpu.VMEM((N, F), jnp.float32)],
        ),
        compiler_params=pltpu.CompilerParams(
            dimension_semantics=("parallel",)),
    )(x_r, w0, b0, wv, bv, ww, bw, wh, bh)

    out = out[:, 0, :]                                  # (B, OUT_W)
    reg_pred = out[:, 0]                                # (B,)
    cls_pred = out[:, 1:1 + n_cls]                      # (B, n_cls)
    A = out[:, A_COL:A_COL + N].reshape(B, N, 1)        # (B, N, 1)
    return reg_pred, cls_pred, A


# pure-JAX reference of identical math (correctness check only)
def reference_forward(x, params):
    B, N, C, H, W = x.shape
    xf = x.reshape(B * N, C, H * W).transpose(0, 2, 1)           # (BN, HW, C)
    h = jnp.maximum(xf @ params["w0"] + params["b0"], 0.0)
    feats = jnp.mean(h, axis=1).reshape(B, N, -1)
    hh = jnp.tanh(feats @ params["wv"] + params["bv"])
    logits = hh @ params["ww"] + params["bw"]
    A = jax.nn.softmax(logits, axis=1)
    pooled_att = jnp.sum(A * feats, axis=1)
    pooled_max = jnp.max(feats, axis=1)
    xcat = jnp.concatenate([pooled_att, pooled_max], axis=-1)
    reg = (xcat @ params["wr"] + params["br"]).reshape(-1)
    reg = 7.0 * jax.nn.sigmoid(reg) - 1.0
    cls = xcat @ params["wc"] + params["bc"]
    return reg, cls, A


if __name__ == "__main__":
    # small shapes consistent with the module's forward
    B, N, C, H, W = 2, 4, 3, 16, 16
    F = 128        # back_feature (synthetic backbone output width)
    HID = 64       # attention hidden (512 in original, shrunk)
    N_CLS = 6      # mode='both' -> n = 6

    key = jax.random.PRNGKey(0)
    ks = jax.random.split(key, 10)
    params = {
        "w0": 0.1 * jax.random.normal(ks[0], (C, F), jnp.float32),
        "b0": 0.1 * jax.random.normal(ks[1], (1, F), jnp.float32),
        "wv": 0.1 * jax.random.normal(ks[2], (F, HID), jnp.float32),
        "bv": 0.1 * jax.random.normal(ks[3], (1, HID), jnp.float32),
        "ww": 0.1 * jax.random.normal(ks[4], (HID, 1), jnp.float32),
        "bw": 0.1 * jax.random.normal(ks[5], (1, 1), jnp.float32),
        "wr": 0.1 * jax.random.normal(ks[6], (2 * F, 1), jnp.float32),
        "br": 0.1 * jax.random.normal(ks[7], (1, 1), jnp.float32),
        "wc": 0.1 * jax.random.normal(ks[8], (2 * F, N_CLS), jnp.float32),
        "bc": 0.1 * jax.random.normal(ks[9], (1, N_CLS), jnp.float32),
    }
    x = jax.random.normal(jax.random.PRNGKey(1), (B, N, C, H, W), jnp.float32)

    reg_pred, cls_pred, A = attention_model_forward(x, params)
    jax.block_until_ready((reg_pred, cls_pred, A))

    reg_r, cls_r, A_r = reference_forward(x, params)
    np.testing.assert_allclose(np.asarray(reg_pred), np.asarray(reg_r), atol=2e-2, rtol=2e-2)
    np.testing.assert_allclose(np.asarray(cls_pred), np.asarray(cls_r), atol=2e-2, rtol=2e-2)
    np.testing.assert_allclose(np.asarray(A), np.asarray(A_r), atol=2e-2, rtol=2e-2)

    assert reg_pred.shape == (B,)
    assert cls_pred.shape == (B, N_CLS)
    assert A.shape == (B, N, 1)
    print("KERNEL_OK")
</pallas_src>

<mosaic_0001>
module attributes {stable_mosaic.version = 11 : i64} {
  func.func @_fused_kernel(%arg0: i32, %arg1: memref<1x4x3x256xf32, #tpu.memory_space<vmem>>, %arg2: memref<3x128xf32, #tpu.memory_space<vmem>>, %arg3: memref<1x128xf32, #tpu.memory_space<vmem>>, %arg4: memref<128x64xf32, #tpu.memory_space<vmem>>, %arg5: memref<1x64xf32, #tpu.memory_space<vmem>>, %arg6: memref<64x1xf32, #tpu.memory_space<vmem>>, %arg7: memref<1x1xf32, #tpu.memory_space<vmem>>, %arg8: memref<256x128xf32, #tpu.memory_space<vmem>>, %arg9: memref<1x128xf32, #tpu.memory_space<vmem>>, %arg10: memref<1x1x128xf32, #tpu.memory_space<vmem>>, %arg11: memref<4x128xf32, #tpu.memory_space<vmem>>) attributes {dimension_semantics = [#tpu.dimension_semantics<parallel>], iteration_bounds = array<i64: 2>, scalar_prefetch = 0 : i64, scratch_operands = 1 : i64, tpu.core_type = #tpu.core_type<tc>, window_params = [{transform_indices = @transform_0, window_bounds = array<i64: 1, 4, 3, 256>}, {pipeline_mode = #tpu.pipeline_mode<synchronous>, transform_indices = @transform_1, window_bounds = array<i64: 3, 128>}, {pipeline_mode = #tpu.pipeline_mode<synchronous>, transform_indices = @transform_2, window_bounds = array<i64: 1, 128>}, {pipeline_mode = #tpu.pipeline_mode<synchronous>, transform_indices = @transform_3, window_bounds = array<i64: 128, 64>}, {pipeline_mode = #tpu.pipeline_mode<synchronous>, transform_indices = @transform_4, window_bounds = array<i64: 1, 64>}, {pipeline_mode = #tpu.pipeline_mode<synchronous>, transform_indices = @transform_5, window_bounds = array<i64: 64, 1>}, {pipeline_mode = #tpu.pipeline_mode<synchronous>, transform_indices = @transform_6, window_bounds = array<i64: 1, 1>}, {pipeline_mode = #tpu.pipeline_mode<synchronous>, transform_indices = @transform_7, window_bounds = array<i64: 256, 128>}, {pipeline_mode = #tpu.pipeline_mode<synchronous>, transform_indices = @transform_8, window_bounds = array<i64: 1, 128>}, {transform_indices = @transform_9, window_bounds = array<i64: 1, 1, 128>}]} {
    %c0 = arith.constant 0 : index
    %c0_0 = arith.constant 0 : index
    %0 = vector.load %arg2[%c0, %c0_0] : memref<3x128xf32, #tpu.memory_space<vmem>>, vector<3x128xf32>
    %c0_1 = arith.constant 0 : index
    %c0_2 = arith.constant 0 : index
    %1 = vector.load %arg3[%c0_1, %c0_2] : memref<1x128xf32, #tpu.memory_space<vmem>>, vector<1x128xf32>
    %c0_3 = arith.constant 0 : index
    %c0_4 = arith.constant 0 : index
    %c0_5 = arith.constant 0 : index
    %c0_6 = arith.constant 0 : index
    %2 = vector.load %arg1[%c0_3, %c0_4, %c0_5, %c0_6] : memref<1x4x3x256xf32, #tpu.memory_space<vmem>>, vector<1x1x3x256xf32>
    %3 = vector.shape_cast %2 : vector<1x1x3x256xf32> to vector<3x256xf32>
    %cst = arith.constant dense<0.000000e+00> : vector<256x128xf32>
    %4 = tpu.matmul %3, %0, %cst {dimension_numbers = #tpu.dot_dimension_numbers<[0], [0], [1], [1], [0, 1, 1, 1], [], []>} : vector<3x256xf32>, vector<3x128xf32>, vector<256x128xf32> -> vector<256x128xf32>
    %5 = vector.broadcast %1 : vector<1x128xf32> to vector<256x128xf32>
    %6 = arith.addf %4, %5 : vector<256x128xf32>
    %cst_7 = arith.constant 0.000000e+00 : f32
    %7 = vector.broadcast %cst_7 : f32 to vector<256x128xf32>
    %8 = arith.maximumf %6, %7 : vector<256x128xf32>
    %cst_8 = arith.constant dense<0.000000e+00> : vector<128xf32>
    %9 = vector.multi_reduction <add>, %8, %cst_8 [0] : vector<256x128xf32> to vector<128xf32>
    %10 = vector.shape_cast %9 : vector<128xf32> to vector<1x128xf32>
    %cst_9 = arith.constant 2.560000e+02 : f32
    %11 = vector.broadcast %cst_9 : f32 to vector<1x128xf32>
    %12 = arith.divf %10, %11 : vector<1x128xf32>
    %c0_10 = arith.constant 0 : index
    %c0_11 = arith.constant 0 : index
    %13 = vector.load %arg11[%c0_10, %c0_11] : memref<4x128xf32, #tpu.memory_space<vmem>>, vector<1x128xf32>
    tpu.vector_store %arg11[%c0_10, %c0_11], %12 {strides = array<i32>} : memref<4x128xf32, #tpu.memory_space<vmem>>, vector<1x128xf32>,
    %c0_12 = arith.constant 0 : index
    %c1 = arith.constant 1 : index
    %c0_13 = arith.constant 0 : index
    %c0_14 = arith.constant 0 : index
    %14 = vector.load %arg1[%c0_12, %c1, %c0_13, %c0_14] : memref<1x4x3x256xf32, #tpu.memory_space<vmem>>, vector<1x1x3x256xf32>
    %15 = vector.shape_cast %14 : vector<1x1x3x256xf32> to vector<3x256xf32>
    %cst_15 = arith.constant dense<0.000000e+00> : vector<256x128xf32>
    %16 = tpu.matmul %15, %0, %cst_15 {dimension_numbers = #tpu.dot_dimension_numbers<[0], [0], [1], [1], [0, 1, 1, 1], [], []>} : vector<3x256xf32>, vector<3x128xf32>, vector<256x128xf32> -> vector<256x128xf32>
    %17 = vector.broadcast %1 : vector<1x128xf32> to vector<256x128xf32>
    %18 = arith.addf %16, %17 : vector<256x128xf32>
    %cst_16 = arith.constant 0.000000e+00 : f32
    %19 = vector.broadcast %cst_16 : f32 to vector<256x128xf32>
    %20 = arith.maximumf %18, %19 : vector<256x128xf32>
    %cst_17 = arith.constant dense<0.000000e+00> : vector<128xf32>
    %21 = vector.multi_reduction <add>, %20, %cst_17 [0] : vector<256x128xf32> to vector<128xf32>
    %22 = vector.shape_cast %21 : vector<128xf32> to vector<1x128xf32>
    %cst_18 = arith.constant 2.560000e+02 : f32
    %23 = vector.broadcast %cst_18 : f32 to vector<1x128xf32>
    %24 = arith.divf %22, %23 : vector<1x128xf32>
    %c1_19 = arith.constant 1 : index
    %c0_20 = arith.constant 0 : index
    %25 = vector.load %arg11[%c1_19, %c0_20] : memref<4x128xf32, #tpu.memory_space<vmem>>, vector<1x128xf32>
    tpu.vector_store %arg11[%c1_19, %c0_20], %24 {strides = array<i32>} : memref<4x128xf32, #tpu.memory_space<vmem>>, vector<1x128xf32>,
    %c0_21 = arith.constant 0 : index
    %c2 = arith.constant 2 : index
    %c0_22 = arith.constant 0 : index
    %c0_23 = arith.constant 0 : index
    %26 = vector.load %arg1[%c0_21, %c2, %c0_22, %c0_23] : memref<1x4x3x256xf32, #tpu.memory_space<vmem>>, vector<1x1x3x256xf32>
    %27 = vector.shape_cast %26 : vector<1x1x3x256xf32> to vector<3x256xf32>
    %cst_24 = arith.constant dense<0.000000e+00> : vector<256x128xf32>
    %28 = tpu.matmul %27, %0, %cst_24 {dimension_numbers = #tpu.dot_dimension_numbers<[0], [0], [1], [1], [0, 1, 1, 1], [], []>} : vector<3x256xf32>, vector<3x128xf32>, vector<256x128xf32> -> vector<256x128xf32>
    %29 = vector.broadcast %1 : vector<1x128xf32> to vector<256x128xf32>
    %30 = arith.addf %28, %29 : vector<256x128xf32>
    %cst_25 = arith.constant 0.000000e+00 : f32
    %31 = vector.broadcast %cst_25 : f32 to vector<256x128xf32>
    %32 = arith.maximumf %30, %31 : vector<256x128xf32>
    %cst_26 = arith.constant dense<0.000000e+00> : vector<128xf32>
    %33 = vector.multi_reduction <add>, %32, %cst_26 [0] : vector<256x128xf32> to vector<128xf32>
    %34 = vector.shape_cast %33 : vector<128xf32> to vector<1x128xf32>
    %cst_27 = arith.constant 2.560000e+02 : f32
    %35 = vector.broadcast %cst_27 : f32 to vector<1x128xf32>
    %36 = arith.divf %34, %35 : vector<1x128xf32>
    %c2_28 = arith.constant 2 : index
    %c0_29 = arith.constant 0 : index
    %37 = vector.load %arg11[%c2_28, %c0_29] : memref<4x128xf32, #tpu.memory_space<vmem>>, vector<1x128xf32>
    tpu.vector_store %arg11[%c2_28, %c0_29], %36 {strides = array<i32>} : memref<4x128xf32, #tpu.memory_space<vmem>>, vector<1x128xf32>,
    %c0_30 = arith.constant 0 : index
    %c3 = arith.constant 3 : index
    %c0_31 = arith.constant 0 : index
    %c0_32 = arith.constant 0 : index
    %38 = vector.load %arg1[%c0_30, %c3, %c0_31, %c0_32] : memref<1x4x3x256xf32, #tpu.memory_space<vmem>>, vector<1x1x3x256xf32>
    %39 = vector.shape_cast %38 : vector<1x1x3x256xf32> to vector<3x256xf32>
    %cst_33 = arith.constant dense<0.000000e+00> : vector<256x128xf32>
    %40 = tpu.matmul %39, %0, %cst_33 {dimension_numbers = #tpu.dot_dimension_numbers<[0], [0], [1], [1], [0, 1, 1, 1], [], []>} : vector<3x256xf32>, vector<3x128xf32>, vector<256x128xf32> -> vector<256x128xf32>
    %41 = vector.broadcast %1 : vector<1x128xf32> to vector<256x128xf32>
    %42 = arith.addf %40, %41 : vector<256x128xf32>
    %cst_34 = arith.constant 0.000000e+00 : f32
    %43 = vector.broadcast %cst_34 : f32 to vector<256x128xf32>
    %44 = arith.maximumf %42, %43 : vector<256x128xf32>
    %cst_35 = arith.constant dense<0.000000e+00> : vector<128xf32>
    %45 = vector.multi_reduction <add>, %44, %cst_35 [0] : vector<256x128xf32> to vector<128xf32>
    %46 = vector.shape_cast %45 : vector<128xf32> to vector<1x128xf32>
    %cst_36 = arith.constant 2.560000e+02 : f32
    %47 = vector.broadcast %cst_36 : f32 to vector<1x128xf32>
    %48 = arith.divf %46, %47 : vector<1x128xf32>
    %c3_37 = arith.constant 3 : index
    %c0_38 = arith.constant 0 : index
    %49 = vector.load %arg11[%c3_37, %c0_38] : memref<4x128xf32, #tpu.memory_space<vmem>>, vector<1x128xf32>
    tpu.vector_store %arg11[%c3_37, %c0_38], %48 {strides = array<i32>} : memref<4x128xf32, #tpu.memory_space<vmem>>, vector<1x128xf32>,
    %c0_39 = arith.constant 0 : index
    %c0_40 = arith.constant 0 : index
    %50 = vector.load %arg11[%c0_39, %c0_40] : memref<4x128xf32, #tpu.memory_space<vmem>>, vector<4x128xf32>
    %c0_41 = arith.constant 0 : index
    %c0_42 = arith.constant 0 : index
    %51 = vector.load %arg4[%c0_41, %c0_42] : memref<128x64xf32, #tpu.memory_space<vmem>>, vector<128x64xf32>
    %cst_43 = arith.constant dense<0.000000e+00> : vector<4x64xf32>
    %52 = tpu.matmul %50, %51, %cst_43 {dimension_numbers = #tpu.dot_dimension_numbers<[1], [0], [0], [1], [0, 0, 1, 1], [], []>} : vector<4x128xf32>, vector<128x64xf32>, vector<4x64xf32> -> vector<4x64xf32>
    %c0_44 = arith.constant 0 : index
    %c0_45 = arith.constant 0 : index
    %53 = vector.load %arg5[%c0_44, %c0_45] : memref<1x64xf32, #tpu.memory_space<vmem>>, vector<1x64xf32>
    %54 = vector.broadcast %53 : vector<1x64xf32> to vector<4x64xf32>
    %55 = arith.addf %52, %54 : vector<4x64xf32>
    %56 = math.tanh %55 : vector<4x64xf32>
    %c0_46 = arith.constant 0 : index
    %c0_47 = arith.constant 0 : index
    %57 = vector.load %arg6[%c0_46, %c0_47] : memref<64x1xf32, #tpu.memory_space<vmem>>, vector<64x1xf32>
    %cst_48 = arith.constant dense<0.000000e+00> : vector<4x1xf32>
    %58 = tpu.matmul %56, %57, %cst_48 {dimension_numbers = #tpu.dot_dimension_numbers<[1], [0], [0], [1], [0, 0, 1, 1], [], []>} : vector<4x64xf32>, vector<64x1xf32>, vector<4x1xf32> -> vector<4x1xf32>
    %c0_49 = arith.constant 0 : index
    %c0_50 = arith.constant 0 : index
    %59 = vector.load %arg7[%c0_49, %c0_50] : memref<1x1xf32, #tpu.memory_space<vmem>>, vector<1x1xf32>
    %60 = vector.broadcast %59 : vector<1x1xf32> to vector<4x1xf32>
    %61 = arith.addf %58, %60 : vector<4x1xf32>
    %cst_51 = arith.constant dense<0xFF800000> : vector<1xf32>
    %62 = vector.multi_reduction <maximumf>, %61, %cst_51 [0] : vector<4x1xf32> to vector<1xf32>
    %63 = vector.shape_cast %62 : vector<1xf32> to vector<1x1xf32>
    %64 = vector.broadcast %63 : vector<1x1xf32> to vector<4x1xf32>
    %65 = arith.subf %61, %64 : vector<4x1xf32>
    %66 = math.exp %65 : vector<4x1xf32>
    %cst_52 = arith.constant dense<0.000000e+00> : vector<1xf32>
    %67 = vector.multi_reduction <add>, %66, %cst_52 [0] : vector<4x1xf32> to vector<1xf32>
    %68 = vector.shape_cast %67 : vector<1xf32> to vector<1x1xf32>
    %69 = tpu.reciprocal %68 {approx = true} : vector<1x1xf32> -> vector<1x1xf32>
    %70 = vector.broadcast %69 : vector<1x1xf32> to vector<4x1xf32>
    %71 = arith.mulf %66, %70 : vector<4x1xf32>
    %72 = vector.broadcast %71 : vector<4x1xf32> to vector<4x128xf32>
    %73 = arith.mulf %72, %50 : vector<4x128xf32>
    %cst_53 = arith.constant dense<0.000000e+00> : vector<128xf32>
    %74 = vector.multi_reduction <add>, %73, %cst_53 [0] : vector<4x128xf32> to vector<128xf32>
    %75 = vector.shape_cast %74 : vector<128xf32> to vector<1x128xf32>
    %cst_54 = arith.constant dense<0xFF800000> : vector<128xf32>
    %76 = vector.multi_reduction <maximumf>, %50, %cst_54 [0] : vector<4x128xf32> to vector<128xf32>
    %77 = vector.shape_cast %76 : vector<128xf32> to vector<1x128xf32>
    %78 = tpu.concatenate %75, %77 in 1 : vector<1x128xf32>, vector<1x128xf32> -> vector<1x256xf32>
    %c0_55 = arith.constant 0 : index
    %c0_56 = arith.constant 0 : index
    %79 = vector.load %arg8[%c0_55, %c0_56] : memref<256x128xf32, #tpu.memory_space<vmem>>, vector<256x128xf32>
    %cst_57 = arith.constant dense<0.000000e+00> : vector<1x128xf32>
    %80 = tpu.matmul %78, %79, %cst_57 {dimension_numbers = #tpu.dot_dimension_numbers<[1], [0], [0], [1], [0, 0, 1, 1], [], []>} : vector<1x256xf32>, vector<256x128xf32>, vector<1x128xf32> -> vector<1x128xf32>
    %c0_58 = arith.constant 0 : index
    %c0_59 = arith.constant 0 : index
    %81 = vector.load %arg9[%c0_58, %c0_59] : memref<1x128xf32, #tpu.memory_space<vmem>>, vector<1x128xf32>
    %82 = arith.addf %80, %81 : vector<1x128xf32>
    %83 = tpu.iota {dimensions = array<i32: 1>} : vector<1x128xi32>
    %84 = arith.negf %82 : vector<1x128xf32>
    %85 = math.exp %84 : vector<1x128xf32>
    %cst_60 = arith.constant 1.000000e+00 : f32
    %86 = vector.broadcast %cst_60 : f32 to vector<1x128xf32>
    %87 = arith.addf %86, %85 : vector<1x128xf32>
    %88 = arith.divf %86, %87 : vector<1x128xf32>
    %cst_61 = arith.constant 7.000000e+00 : f32
    %89 = vector.broadcast %cst_61 : f32 to vector<1x128xf32>
    %90 = arith.mulf %89, %88 : vector<1x128xf32>
    %cst_62 = arith.constant 1.000000e+00 : f32
    %91 = vector.broadcast %cst_62 : f32 to vector<1x128xf32>
    %92 = arith.subf %90, %91 : vector<1x128xf32>
    %c0_i32 = arith.constant 0 : i32
    %93 = vector.broadcast %c0_i32 : i32 to vector<1x128xi32>
    %94 = arith.cmpi eq, %83, %93 : vector<1x128xi32>
    %95 = arith.select %94, %92, %82 : vector<1x128xi1>, vector<1x128xf32>
    %96 = tpu.iota {dimensions = array<i32: 0>} : vector<4x128xi32>
    %97 = tpu.iota {dimensions = array<i32: 1>} : vector<4x128xi32>
    %c8_i32 = arith.constant 8 : i32
    %98 = vector.broadcast %c8_i32 : i32 to vector<4x128xi32>
    %99 = arith.addi %96, %98 : vector<4x128xi32>
    %100 = arith.cmpi eq, %97, %99 : vector<4x128xi32>
    %101 = arith.extui %100 : vector<4x128xi1> to vector<4x128xi32>
    %102 = arith.sitofp %101 : vector<4x128xi32> to vector<4x128xf32>
    %103 = vector.broadcast %71 : vector<4x1xf32> to vector<4x128xf32>
    %104 = arith.mulf %103, %102 : vector<4x128xf32>
    %cst_63 = arith.constant dense<0.000000e+00> : vector<128xf32>
    %105 = vector.multi_reduction <add>, %104, %cst_63 [0] : vector<4x128xf32> to vector<128xf32>
    %106 = vector.shape_cast %105 : vector<128xf32> to vector<1x128xf32>
    %107 = arith.addf %95, %106 : vector<1x128xf32>
    %c0_64 = arith.constant 0 : index
    %c0_65 = arith.constant 0 : index
    %c0_66 = arith.constant 0 : index
    %108 = vector.load %arg10[%c0_64, %c0_65, %c0_66] : memref<1x1x128xf32, #tpu.memory_space<vmem>>, vector<1x1x128xf32>
    %109 = vector.shape_cast %108 : vector<1x1x128xf32> to vector<1x128xf32>
    %110 = vector.shape_cast %107 : vector<1x128xf32> to vector<1x1x128xf32>
    tpu.vector_store %arg10[%c0_64, %c0_65, %c0_66], %110 {strides = array<i32>} : memref<1x1x128xf32, #tpu.memory_space<vmem>>, vector<1x1x128xf32>,
    return
  }
  func.func @transform_0(%arg0: i32) -> (i32, i32, i32, i32) {
    %c0_i32 = arith.constant 0 : i32
    %c0_i32_0 = arith.constant 0 : i32
    %c0_i32_1 = arith.constant 0 : i32
    %c0_i32_2 = arith.constant 0 : i32
    return %arg0, %c0_i32, %c0_i32_0, %c0_i32_1 : i32, i32, i32, i32
  }
  func.func @transform_1(%arg0: i32) -> (i32, i32) {
    %c0_i32 = arith.constant 0 : i32
    %c0_i32_0 = arith.constant 0 : i32
    %c0_i32_1 = arith.constant 0 : i32
    return %c0_i32, %c0_i32_0 : i32, i32
  }
  func.func @transform_2(%arg0: i32) -> (i32, i32) {
    %c0_i32 = arith.constant 0 : i32
    %c0_i32_0 = arith.constant 0 : i32
    %c0_i32_1 = arith.constant 0 : i32
    return %c0_i32, %c0_i32_0 : i32, i32
  }
  func.func @transform_3(%arg0: i32) -> (i32, i32) {
    %c0_i32 = arith.constant 0 : i32
    %c0_i32_0 = arith.constant 0 : i32
    %c0_i32_1 = arith.constant 0 : i32
    return %c0_i32, %c0_i32_0 : i32, i32
  }
  func.func @transform_4(%arg0: i32) -> (i32, i32) {
    %c0_i32 = arith.constant 0 : i32
    %c0_i32_0 = arith.constant 0 : i32
    %c0_i32_1 = arith.constant 0 : i32
    return %c0_i32, %c0_i32_0 : i32, i32
  }
  func.func @transform_5(%arg0: i32) -> (i32, i32) {
    %c0_i32 = arith.constant 0 : i32
    %c0_i32_0 = arith.constant 0 : i32
    %c0_i32_1 = arith.constant 0 : i32
    return %c0_i32, %c0_i32_0 : i32, i32
  }
  func.func @transform_6(%arg0: i32) -> (i32, i32) {
    %c0_i32 = arith.constant 0 : i32
    %c0_i32_0 = arith.constant 0 : i32
    %c0_i32_1 = arith.constant 0 : i32
    return %c0_i32, %c0_i32_0 : i32, i32
  }
  func.func @transform_7(%arg0: i32) -> (i32, i32) {
    %c0_i32 = arith.constant 0 : i32
    %c0_i32_0 = arith.constant 0 : i32
    %c0_i32_1 = arith.constant 0 : i32
    return %c0_i32, %c0_i32_0 : i32, i32
  }
  func.func @transform_8(%arg0: i32) -> (i32, i32) {
    %c0_i32 = arith.constant 0 : i32
    %c0_i32_0 = arith.constant 0 : i32
    %c0_i32_1 = arith.constant 0 : i32
    return %c0_i32, %c0_i32_0 : i32, i32
  }
  func.func @transform_9(%arg0: i32) -> (i32, i32, i32) {
    %c0_i32 = arith.constant 0 : i32
    %c0_i32_0 = arith.constant 0 : i32
    %c0_i32_1 = arith.constant 0 : i32
    return %arg0, %c0_i32, %c0_i32_0 : i32, i32, i32
  }
}

</mosaic_0001>

<llo_original>
// kernel: tpu_custom_call.1
$region0: #{tpu_custom_call.1}
  #allocation0 [shape = 'u32[]', space=smem, size = 0x4, offset = 0x4, fixed_abs, tag = 'smem constant byte address 0x4 - core index']
  #allocation1 [shape = 'u32[144,128]{1,0:T(1,128)}', space=vmem, size = 0x12000, scoped, tag = 'internal scratch']
  #allocation2 [shape = 'f32[4,128]{1,0:T(4,128)}', space=vmem, size = 0x800, scoped, tag = 'scratch operand']
  #allocation3 [shape = 'f32[1,1]{1,0:T(1,128)S(1)}', space=vmem, size = 0x200, scoped, tag = 'scoped memory for tpu_custom_call.1']
  %s0 = inlined_call_operand.vmem [shape: f32[2,4,3,256], index: 0, kind: input, shape index: {}]
  %s1 = inlined_call_operand.vmem [shape: f32[3,128], index: 1, kind: input, shape index: {}]
  %s2 = inlined_call_operand.vmem [shape: f32[1,128], index: 2, kind: input, shape index: {}]
  %s3 = inlined_call_operand.vmem [shape: f32[128,64], index: 3, kind: input, shape index: {}]
  %s4 = inlined_call_operand.vmem [shape: f32[1,64], index: 4, kind: input, shape index: {}]
  %s5 = inlined_call_operand.vmem [shape: f32[64,1], index: 5, kind: input, shape index: {}]
  %s6 = inlined_call_operand.<no memory space> [shape: f32[1,1], index: 6, kind: input, shape index: {}]
  %s7 = inlined_call_operand.vmem [shape: f32[256,128], index: 7, kind: input, shape index: {}]
  %s8 = inlined_call_operand.vmem [shape: f32[1,128], index: 8, kind: input, shape index: {}]
  %s9 = inlined_call_operand.hbm [shape: f32[2,1,128], index: 9, kind: output, shape index: {}]
  %s10 = sld [smem:[#allocation0]]
  $region69: #{tpu_custom_call.1} parent=0
    _
  %s12 = ssub.s32 1, %s10
  %s13 = scalar_select 0, %s12, %s10
  %v14 = vstv %s6
  %15 = vst [vmem:[#allocation3] sm:$0x1] %v14
  $region1: #{tpu_custom_call.1} parent=0
    #allocation4 [shape = 'u8[1024]{0}', space=vmem, size = 0x400, scoped, tag = 'output window, operand 0']
    #allocation5 [shape = 's32[2]{0}', space=sflag, size = 0x8, scoped, tag = 'scoped memory for tpu_custom_call.1']
    %16 = vsyncpa [#allocation5], 0
    %s17 = scalar_lea.sflag [#allocation5], 1
    %18 = vsyncpa %s17, 0
    loop: start=0, step=1, limit=4
    $region2: #{tpu_custom_call.1} parent=1 // loop_pre_header
      _
    $region3: #{tpu_custom_call.1} parent=1 // loop_header
      %s20 = sphi 0, %s24
      %p21 = scmp.ge.s32.totalorder %s20, 4
      %s30 = sphi 0, %s32
      %s33 = sphi 0, %s30
      %s34 = sphi 0, %s33
      %s50 = sphi 0, %s34
      %s54 = sphi 0, %s54
      %s56 = sphi 0, %s54
      %s57 = sphi 0, %s56
      %s71 = sphi 0, %s57
      %s75 = sphi 0, %s75
      %s77 = sphi 0, %s75
      %s78 = sphi 0, %s77
      %s92 = sphi 0, %s78
      %s96 = sphi 0, %s96
      %s98 = sphi 0, %s96
      %s99 = sphi 0, %s98
      %s113 = sphi 0, %s99
      %s117 = sphi 0, %s117
      %s119 = sphi 0, %s117
      %s120 = sphi 0, %s119
      %s134 = sphi 0, %s120
      %s138 = sphi 0, %s138
      %s140 = sphi 0, %s138
      %s141 = sphi 0, %s140
      %s155 = sphi 0, %s141
      %s159 = sphi 0, %s159
      %s161 = sphi 0, %s159
      %s162 = sphi 0, %s161
      %s176 = sphi 0, %s162
      %s180 = sphi 0, %s180
      %s182 = sphi 0, %s180
      %s183 = sphi 0, %s182
      %s197 = sphi 0, %s183
      %s201 = sphi 0, %s201
      %s203 = sphi 0, %s201
      %s204 = sphi 0, %s203
      %s218 = sphi 0, %s204
      %s224 = sphi 0, %s226
      %s227 = sphi 0, %s224
      %s228 = sphi 0, %s227
      %s244 = sphi 0, %s228
    $region4: #{tpu_custom_call.1} parent=1 // loop_header_branch
      %23 = sbr.rel (%p21) target = $region8
    $region5: #{tpu_custom_call.1} parent=1 // loop_body
      %s25 = ssub.s32 %s20, 1
      %s26 = ssub.s32 %s20, 2
      %s27 = sadd.s32 %s20, 1
      %s28 = ssub.s32 %s20, %s27
      %p29 = scmp.eq.s32.totalorder %s28, 0
      %s31 = sadd.s32 %s30, 1
      %s32 = scalar_select %p29, %s30, %s31
      %p35 = pneg %p29
      %p36 = scmp.eq.s32.totalorder %s20, 1
      %p37 = por %p35, %p36
      %p38 = scmp.ne.s32.totalorder %s30, %s33
      %p39 = scmp.eq.s32.totalorder %s20, 0
      %p40 = por %p38, %p39
      %p41 = scmp.ne.s32.totalorder %s30, %s33
      %p42 = scmp.eq.s32.totalorder %s25, 1
      %p43 = por %p41, %p42
      %p44 = scmp.ne.s32.totalorder %s33, %s34
      %p45 = scmp.eq.s32.totalorder %s25, 0
      %p46 = por %p44, %p45
      %p47 = scmp.ne.s32.totalorder %s33, %s34
      %p48 = scmp.eq.s32.totalorder %s26, 1
      %p49 = por %p47, %p48
      %p51 = scmp.ne.s32.totalorder %s34, %s50
      %p52 = scmp.eq.s32.totalorder %s26, 0
      %p53 = por %p51, %p52
      %s55 = sadd.s32 %s54, 1
      %p58 = scmp.eq.s32.totalorder %s20, 1
      %p59 = scmp.ne.s32.totalorder %s54, %s56
      %p60 = scmp.eq.s32.totalorder %s20, 0
      %p61 = por %p59, %p60
      %p62 = scmp.ne.s32.totalorder %s54, %s56
      %p63 = scmp.eq.s32.totalorder %s25, 1
      %p64 = por %p62, %p63
      %p65 = scmp.ne.s32.totalorder %s56, %s57
      %p66 = scmp.eq.s32.totalorder %s25, 0
      %p67 = por %p65, %p66
      %p68 = scmp.ne.s32.totalorder %s56, %s57
      %p69 = scmp.eq.s32.totalorder %s26, 1
      %p70 = por %p68, %p69
      %p72 = scmp.ne.s32.totalorder %s57, %s71
      %p73 = scmp.eq.s32.totalorder %s26, 0
      %p74 = por %p72, %p73
      %s76 = sadd.s32 %s75, 1
      %p79 = scmp.eq.s32.totalorder %s20, 1
      %p80 = scmp.ne.s32.totalorder %s75, %s77
      %p81 = scmp.eq.s32.totalorder %s20, 0
      %p82 = por %p80, %p81
      %p83 = scmp.ne.s32.totalorder %s75, %s77
      %p84 = scmp.eq.s32.totalorder %s25, 1
      %p85 = por %p83, %p84
      %p86 = scmp.ne.s32.totalorder %s77, %s78
      %p87 = scmp.eq.s32.totalorder %s25, 0
      %p88 = por %p86, %p87
      %p89 = scmp.ne.s32.totalorder %s77, %s78
      %p90 = scmp.eq.s32.totalorder %s26, 1
      %p91 = por %p89, %p90
      %p93 = scmp.ne.s32.totalorder %s78, %s92
      %p94 = scmp.eq.s32.totalorder %s26, 0
      %p95 = por %p93, %p94
      %s97 = sadd.s32 %s96, 1
      %p100 = scmp.eq.s32.totalorder %s20, 1
      %p101 = scmp.ne.s32.totalorder %s96, %s98
      %p102 = scmp.eq.s32.totalorder %s20, 0
      %p103 = por %p101, %p102
      %p104 = scmp.ne.s32.totalorder %s96, %s98
      %p105 = scmp.eq.s32.totalorder %s25, 1
      %p106 = por %p104, %p105
      %p107 = scmp.ne.s32.totalorder %s98, %s99
      %p108 = scmp.eq.s32.totalorder %s25, 0
      %p109 = por %p107, %p108
      %p110 = scmp.ne.s32.totalorder %s98, %s99
      %p111 = scmp.eq.s32.totalorder %s26, 1
      %p112 = por %p110, %p111
      %p114 = scmp.ne.s32.totalorder %s99, %s113
      %p115 = scmp.eq.s32.totalorder %s26, 0
      %p116 = por %p114, %p115
      %s118 = sadd.s32 %s117, 1
      %p121 = scmp.eq.s32.totalorder %s20, 1
      %p122 = scmp.ne.s32.totalorder %s117, %s119
      %p123 = scmp.eq.s32.totalorder %s20, 0
      %p124 = por %p122, %p123
      %p125 = scmp.ne.s32.totalorder %s117, %s119
      %p126 = scmp.eq.s32.totalorder %s25, 1
      %p127 = por %p125, %p126
      %p128 = scmp.ne.s32.totalorder %s119, %s120
      %p129 = scmp.eq.s32.totalorder %s25, 0
      %p130 = por %p128, %p129
      %p131 = scmp.ne.s32.totalorder %s119, %s120
      %p132 = scmp.eq.s32.totalorder %s26, 1
      %p133 = por %p131, %p132
      %p135 = scmp.ne.s32.totalorder %s120, %s134
      %p136 = scmp.eq.s32.totalorder %s26, 0
      %p137 = por %p135, %p136
      %s139 = sadd.s32 %s138, 1
      %p142 = scmp.eq.s32.totalorder %s20, 1
      %p143 = scmp.ne.s32.totalorder %s138, %s140
      %p144 = scmp.eq.s32.totalorder %s20, 0
      %p145 = por %p143, %p144
      %p146 = scmp.ne.s32.totalorder %s138, %s140
      %p147 = scmp.eq.s32.totalorder %s25, 1
      %p148 = por %p146, %p147
      %p149 = scmp.ne.s32.totalorder %s140, %s141
      %p150 = scmp.eq.s32.totalorder %s25, 0
      %p151 = por %p149, %p150
      %p152 = scmp.ne.s32.totalorder %s140, %s141
      %p153 = scmp.eq.s32.totalorder %s26, 1
      %p154 = por %p152, %p153
      %p156 = scmp.ne.s32.totalorder %s141, %s155
      %p157 = scmp.eq.s32.totalorder %s26, 0
      %p158 = por %p156, %p157
      %s160 = sadd.s32 %s159, 1
      %p163 = scmp.eq.s32.totalorder %s20, 1
      %p164 = scmp.ne.s32.totalorder %s159, %s161
      %p165 = scmp.eq.s32.totalorder %s20, 0
      %p166 = por %p164, %p165
      %p167 = scmp.ne.s32.totalorder %s159, %s161
      %p168 = scmp.eq.s32.totalorder %s25, 1
      %p169 = por %p167, %p168
      %p170 = scmp.ne.s32.totalorder %s161, %s162
      %p171 = scmp.eq.s32.totalorder %s25, 0
      %p172 = por %p170, %p171
      %p173 = scmp.ne.s32.totalorder %s161, %s162
      %p174 = scmp.eq.s32.totalorder %s26, 1
      %p175 = por %p173, %p174
      %p177 = scmp.ne.s32.totalorder %s162, %s176
      %p178 = scmp.eq.s32.totalorder %s26, 0
      %p179 = por %p177, %p178
      %s181 = sadd.s32 %s180, 1
      %p184 = scmp.eq.s32.totalorder %s20, 1
      %p185 = scmp.ne.s32.totalorder %s180, %s182
      %p186 = scmp.eq.s32.totalorder %s20, 0
      %p187 = por %p185, %p186
      %p188 = scmp.ne.s32.totalorder %s180, %s182
      %p189 = scmp.eq.s32.totalorder %s25, 1
      %p190 = por %p188, %p189
      %p191 = scmp.ne.s32.totalorder %s182, %s183
      %p192 = scmp.eq.s32.totalorder %s25, 0
      %p193 = por %p191, %p192
      %p194 = scmp.ne.s32.totalorder %s182, %s183
      %p195 = scmp.eq.s32.totalorder %s26, 1
      %p196 = por %p194, %p195
      %p198 = scmp.ne.s32.totalorder %s183, %s197
      %p199 = scmp.eq.s32.totalorder %s26, 0
      %p200 = por %p198, %p199
      %s202 = sadd.s32 %s201, 1
      %p205 = scmp.eq.s32.totalorder %s20, 1
      %p206 = scmp.ne.s32.totalorder %s201, %s203
      %p207 = scmp.eq.s32.totalorder %s20, 0
      %p208 = por %p206, %p207
      %p209 = scmp.ne.s32.totalorder %s201, %s203
      %p210 = scmp.eq.s32.totalorder %s25, 1
      %p211 = por %p209, %p210
      %p212 = scmp.ne.s32.totalorder %s203, %s204
      %p213 = scmp.eq.s32.totalorder %s25, 0
      %p214 = por %p212, %p213
      %p215 = scmp.ne.s32.totalorder %s203, %s204
      %p216 = scmp.eq.s32.totalorder %s26, 1
      %p217 = por %p215, %p216
      %p219 = scmp.ne.s32.totalorder %s204, %s218
      %p220 = scmp.eq.s32.totalorder %s26, 0
      %p221 = por %p219, %p220
      %s222 = ssub.s32 %s20, %s27
      %p223 = scmp.eq.s32.totalorder %s222, 0
      %s225 = sadd.s32 %s224, 1
      %s226 = scalar_select %p223, %s224, %s225
      %p229 = pneg %p223
      %p230 = scmp.eq.s32.totalorder %s20, 1
      %p231 = por %p229, %p230
      %p232 = scmp.ne.s32.totalorder %s224, %s227
      %p233 = scmp.eq.s32.totalorder %s20, 0
      %p234 = por %p232, %p233
      %p235 = scmp.ne.s32.totalorder %s224, %s227
      %p236 = scmp.eq.s32.totalorder %s25, 1
      %p237 = por %p235, %p236
      %p238 = scmp.ne.s32.totalorder %s227, %s228
      %p239 = scmp.eq.s32.totalorder %s25, 0
      %p240 = por %p238, %p239
      %p241 = scmp.ne.s32.totalorder %s227, %s228
      %p242 = scmp.eq.s32.totalorder %s26, 1
      %p243 = por %p241, %p242
      %p245 = scmp.ne.s32.totalorder %s228, %s244
      %p246 = scmp.eq.s32.totalorder %s26, 0
      %p247 = por %p245, %p246
      %p248 = scmp.le.s32.totalorder 1, %s20
      %p249 = scmp.lt.s32.totalorder %s20, 3
      %p250 = pnand %p248, %p249
      %p251 = pneg %p250
      // Predicated region
      $region9: #{tpu_custom_call.1} parent=5 // pred_check
        _
      $region10: #{tpu_custom_call.1} parent=5 // pred_check_branch
        %253 = sbr.rel (%p250) target = $region12
      $region11: #{tpu_custom_call.1} parent=5 // pred_region
        %s254 = ssub.s32 %s20, 1
        // Predicated region
        $region13: #{tpu_custom_call.1} parent=11 // pred_check
          %p255 = pneg %p67
        $region14: #{tpu_custom_call.1} parent=11 // pred_check_branch
          %257 = sbr.rel (%p255) target = $region16
        $region15: #{tpu_custom_call.1} parent=11 // pred_region
          _
        $region16: #{tpu_custom_call.1} parent=11 // pred_fallthru
          _
        // Predicated region
        $region17: #{tpu_custom_call.1} parent=11 // pred_check
          %p258 = pneg %p88
        $region18: #{tpu_custom_call.1} parent=11 // pred_check_branch
          %260 = sbr.rel (%p258) target = $region20
        $region19: #{tpu_custom_call.1} parent=11 // pred_region
          _
        $region20: #{tpu_custom_call.1} parent=11 // pred_fallthru
          _
        // Predicated region
        $region21: #{tpu_custom_call.1} parent=11 // pred_check
          %p261 = pneg %p109
        $region22: #{tpu_custom_call.1} parent=11 // pred_check_branch
          %263 = sbr.rel (%p261) target = $region24
        $region23: #{tpu_custom_call.1} parent=11 // pred_region
          _
        $region24: #{tpu_custom_call.1} parent=11 // pred_fallthru
          _
        // Predicated region
        $region25: #{tpu_custom_call.1} parent=11 // pred_check
          %p264 = pneg %p130
        $region26: #{tpu_custom_call.1} parent=11 // pred_check_branch
          %266 = sbr.rel (%p264) target = $region28
        $region27: #{tpu_custom_call.1} parent=11 // pred_region
          _
        $region28: #{tpu_custom_call.1} parent=11 // pred_fallthru
          _
        // Predicated region
        $region29: #{tpu_custom_call.1} parent=11 // pred_check
          %p267 = pneg %p151
        $region30: #{tpu_custom_call.1} parent=11 // pred_check_branch
          %269 = sbr.rel (%p267) target = $region32
        $region31: #{tpu_custom_call.1} parent=11 // pred_region
          _
        $region32: #{tpu_custom_call.1} parent=11 // pred_fallthru
          _
        // Predicated region
        $region33: #{tpu_custom_call.1} parent=11 // pred_check
          %p270 = pneg %p172
        $region34: #{tpu_custom_call.1} parent=11 // pred_check_branch
          %272 = sbr.rel (%p270) target = $region36
        $region35: #{tpu_custom_call.1} parent=11 // pred_region
          _
        $region36: #{tpu_custom_call.1} parent=11 // pred_fallthru
          _
        // Predicated region
        $region37: #{tpu_custom_call.1} parent=11 // pred_check
          %p273 = pneg %p193
        $region38: #{tpu_custom_call.1} parent=11 // pred_check_branch
          %275 = sbr.rel (%p273) target = $region40
        $region39: #{tpu_custom_call.1} parent=11 // pred_region
          _
        $region40: #{tpu_custom_call.1} parent=11 // pred_fallthru
          _
        // Predicated region
        $region41: #{tpu_custom_call.1} parent=11 // pred_check
          %p276 = pneg %p214
        $region42: #{tpu_custom_call.1} parent=11 // pred_check_branch
          %278 = sbr.rel (%p276) target = $region44
        $region43: #{tpu_custom_call.1} parent=11 // pred_region
          _
        $region44: #{tpu_custom_call.1} parent=11 // pred_fallthru
          _
      $region12: #{tpu_custom_call.1} parent=5 // pred_fallthru
        _
      %p279 = scmp.lt.s32.totalorder %s20, 2
      // Predicated region
      $region45: #{tpu_custom_call.1} parent=5 // pred_check
        %p280 = pneg %p279
      $region46: #{tpu_custom_call.1} parent=5 // pred_check_branch
        %282 = sbr.rel (%p280) target = $region48
      $region47: #{tpu_custom_call.1} parent=5 // pred_region
        // Predicated region
        $region49: #{tpu_custom_call.1} parent=47 // pred_check
          %p283 = pneg %p40
        $region50: #{tpu_custom_call.1} parent=47 // pred_check_branch
          %285 = sbr.rel (%p283) target = $region52
        $region51: #{tpu_custom_call.1} parent=47 // pred_region
          %p286 = scmp.lt.s32.totalorder %s20, 1
          %s287 = scalar_select %p286, %s20, 1
          %s288 = smul.addr %s287, 8
          %s289 = smul.addr %s288, 4
          %s290 = scalar_lea.vmem %s0, %s289
        $region52: #{tpu_custom_call.1} parent=47 // pred_fallthru
          _
      $region48: #{tpu_custom_call.1} parent=5 // pred_fallthru
        _
      %p291 = scmp.le.s32.totalorder 1, %s20
      %p292 = scmp.lt.s32.totalorder %s20, 3
      %p293 = pnand %p291, %p292
      %p294 = pneg %p293
      // Predicated region
      $region53: #{tpu_custom_call.1} parent=5 // pred_check
        _
      $region54: #{tpu_custom_call.1} parent=5 // pred_check_branch
        %296 = sbr.rel (%p293) target = $region56
      $region55: #{tpu_custom_call.1} parent=5 // pred_region
        %s297 = ssub.s32 %s20, 1
        %p298 = scmp.lt.s32.totalorder %s25, 1
        %s299 = scalar_select %p298, %s25, 1
        %s300 = smul.addr %s299, 8
        %s301 = smul.addr %s300, 4
        %s302 = scalar_lea.vmem %s0, %s301
        %p303 = pneg %p46
        %p304 = pneg %p43
        %p305 = pneg %p67
        %p306 = pneg %p64
        %p307 = pneg %p88
        %p308 = pneg %p85
        %p309 = pneg %p109
        %p310 = pneg %p106
        %p311 = pneg %p130
        %p312 = pneg %p127
        %p313 = pneg %p151
        %p314 = pneg %p148
        %p315 = pneg %p172
        %p316 = pneg %p169
        %p317 = pneg %p193
        %p318 = pneg %p190
        %p319 = pneg %p214
        %p320 = pneg %p211
        %p321 = pneg %p240
        %p322 = pneg %p237
        %s323 = sand.u32 %s227, 1
        %s324 = scalar_lea.sflag [#allocation5], %s323
        %s325 = sand.u32 %s227, 1
        %s326 = scalar_lea.vmem [#allocation4], %s325
        %p327 = scmp.lt.s32.totalorder %s25, 1
        %s328 = scalar_select %p327, %s25, 1
        %s329 = smul.addr %s328, 8
        %s330 = smul.addr %s329, 4
        %s331 = scalar_lea.vmem %s0, %s330
        %v332 = vld [vmem:[%s1] sm:$0x7]
        %v333 = vld [vmem:[%s2] sm:$0x1]
        %v334 = vld [vmem:[%s331] sm:$0x77]
        %v336 = vlaneseq
        %v337 = vshrl.u32 %v336, 7
        %v338 = vsub.s32 0, %v337
        %v339 = vrot.slane %v333, %v338
        %v342 = vcombine.high %v334, %v334
        %344 = vxpose.xlu0.b32.start [1/16] %v334, 128
        %345 = vxpose.xlu0.b32.cont [2/16] 0.0, 128
        %346 = vxpose.xlu0.b32.cont [3/16] 0.0, 128
        %347 = vxpose.xlu0.b32.cont [4/16] 0.0, 128
        %348 = vxpose.xlu0.b32.cont [5/16] 0.0, 128
        %349 = vxpose.xlu0.b32.cont [6/16] 0.0, 128
        %350 = vxpose.xlu0.b32.cont [7/16] 0.0, 128
        %351 = vxpose.xlu0.b32.cont [8/16] 0.0, 128
        %352 = vxpose.xlu0.b32.cont [9/16] 0.0, 128
        %353 = vxpose.xlu0.b32.cont [10/16] 0.0, 128
        %354 = vxpose.xlu0.b32.cont [11/16] 0.0, 128
        %355 = vxpose.xlu0.b32.cont [12/16] 0.0, 128
        %356 = vxpose.xlu0.b32.cont [13/16] 0.0, 128
        %357 = vxpose.xlu0.b32.cont [14/16] 0.0, 128
        %358 = vxpose.xlu0.b32.cont [15/16] 0.0, 128
        %359 = vxpose.xlu0.b32.end [16/16] 0.0, 128
        %v360 = vpop.trf.xlu0
        %v361 = vpop.trf.xlu0
        %v362 = vpop.trf.xlu0
        %v363 = vpop.trf.xlu0
        %v364 = vpop.trf.xlu0
        %v365 = vpop.trf.xlu0
        %v366 = vpop.trf.xlu0
        %v367 = vpop.trf.xlu0
        %v368 = vpop.trf.xlu0
        %v369 = vpop.trf.xlu0
        %v370 = vpop.trf.xlu0
        %v371 = vpop.trf.xlu0
        %v372 = vpop.trf.xlu0
        %v373 = vpop.trf.xlu0
        %v374 = vpop.trf.xlu0
        %v375 = vpop.trf.xlu0
        %376 = vxpose.xlu0.b32.start [1/16] %v342, 128
        %377 = vxpose.xlu0.b32.cont [2/16] 0.0, 128
        %378 = vxpose.xlu0.b32.cont [3/16] 0.0, 128
        %379 = vxpose.xlu0.b32.cont [4/16] 0.0, 128
        %380 = vxpose.xlu0.b32.cont [5/16] 0.0, 128
        %381 = vxpose.xlu0.b32.cont [6/16] 0.0, 128
        %382 = vxpose.xlu0.b32.cont [7/16] 0.0, 128
        %383 = vxpose.xlu0.b32.cont [8/16] 0.0, 128
        %384 = vxpose.xlu0.b32.cont [9/16] 0.0, 128
        %385 = vxpose.xlu0.b32.cont [10/16] 0.0, 128
        %386 = vxpose.xlu0.b32.cont [11/16] 0.0, 128
        %387 = vxpose.xlu0.b32.cont [12/16] 0.0, 128
        %388 = vxpose.xlu0.b32.cont [13/16] 0.0, 128
        %389 = vxpose.xlu0.b32.cont [14/16] 0.0, 128
        %390 = vxpose.xlu0.b32.cont [15/16] 0.0, 128
        %391 = vxpose.xlu0.b32.end [16/16] 0.0, 128
        %v392 = vpop.trf.xlu0
        %v393 = vpop.trf.xlu0
        %v394 = vpop.trf.xlu0
        %v395 = vpop.trf.xlu0
        %v396 = vpop.trf.xlu0
        %v397 = vpop.trf.xlu0
        %v398 = vpop.trf.xlu0
        %v399 = vpop.trf.xlu0
        %v400 = vpop.trf.xlu0
        %v401 = vpop.trf.xlu0
        %v402 = vpop.trf.xlu0
        %v403 = vpop.trf.xlu0
        %v404 = vpop.trf.xlu0
        %v405 = vpop.trf.xlu0
        %v406 = vpop.trf.xlu0
        %v407 = vpop.trf.xlu0
        %vm408 = vcmask 23552
        %v410 = vsel %vm408, %v360, 0
        %v413 = vsel %vm408, %v361, 0
        %v416 = vsel %vm408, %v362, 0
        %v419 = vsel %vm408, %v363, 0
        %v422 = vsel %vm408, %v364, 0
        %v425 = vsel %vm408, %v365, 0
        %v428 = vsel %vm408, %v366, 0
        %v431 = vsel %vm408, %v367, 0
        %v434 = vsel %vm408, %v368, 0
        %v437 = vsel %vm408, %v369, 0
        %v440 = vsel %vm408, %v370, 0
        %v443 = vsel %vm408, %v371, 0
        %v446 = vsel %vm408, %v372, 0
        %v449 = vsel %vm408, %v373, 0
        %v452 = vsel %vm408, %v374, 0
        %v455 = vsel %vm408, %v375, 0
        %v458 = vsel %vm408, %v392, 0
        %v461 = vsel %vm408, %v393, 0
        %v464 = vsel %vm408, %v394, 0
        %v467 = vsel %vm408, %v395, 0
        %v470 = vsel %vm408, %v396, 0
        %v473 = vsel %vm408, %v397, 0
        %v476 = vsel %vm408, %v398, 0
        %v479 = vsel %vm408, %v399, 0
        %v482 = vsel %vm408, %v400, 0
        %v485 = vsel %vm408, %v401, 0
        %v488 = vsel %vm408, %v402, 0
        %v491 = vsel %vm408, %v403, 0
        %v494 = vsel %vm408, %v404, 0
        %v497 = vsel %vm408, %v405, 0
        %v500 = vsel %vm408, %v406, 0
        %v503 = vsel %vm408, %v407, 0
        %vm505 = vcmask 1042432
        %v507 = vsel %vm505, %v332, 0
        %509 = vmatprep.subr.mxu0 0.0
        %510 = vmatpush1.msra.mxu0 %v507
        %511 = vmatprep.subr.mxu0 0.0
        %512 = vmatpush1.msra.mxu0 0.0
        %513 = vmatprep.subr.mxu0 0.0
        %514 = vmatpush1.msra.mxu0 0.0
        %515 = vmatprep.subr.mxu0 0.0
        %516 = vmatpush1.msra.mxu0 0.0
        %517 = vmatprep.subr.mxu0 0.0
        %518 = vmatpush1.msra.mxu0 0.0
        %519 = vmatprep.subr.mxu0 0.0
        %520 = vmatpush1.msra.mxu0 0.0
        %521 = vmatprep.subr.mxu0 0.0
        %522 = vmatpush1.msra.mxu0 0.0
        %523 = vmatprep.subr.mxu0 0.0
        %524 = vmatpush1.msra.mxu0 0.0
        %525 = vmatprep.subr.mxu0 0.0
        %526 = vmatpush1.msra.mxu0 0.0
        %527 = vmatprep.subr.mxu0 0.0
        %528 = vmatpush1.msra.mxu0 0.0
        %529 = vmatprep.subr.mxu0 0.0
        %530 = vmatpush1.msra.mxu0 0.0
        %531 = vmatprep.subr.mxu0 0.0
        %532 = vmatpush1.msra.mxu0 0.0
        %533 = vmatprep.subr.mxu0 0.0
        %534 = vmatpush1.msra.mxu0 0.0
        %535 = vmatprep.subr.mxu0 0.0
        %536 = vmatpush1.msra.mxu0 0.0
        %537 = vmatprep.subr.mxu0 0.0
        %538 = vmatpush1.msra.mxu0 0.0
        %539 = vmatprep.subr.mxu0 0.0
        %540 = vmatpush1.msra.mxu0 0.0
        %541 = vmatprep.subr.mxu0 0.0
        %542 = vmatpush1.msra.mxu0 0.0
        %543 = vmatprep.subr.mxu0 0.0
        %544 = vmatpush1.msra.mxu0 0.0
        %545 = vmatprep.subr.mxu0 0.0
        %546 = vmatpush1.msra.mxu0 0.0
        %547 = vmatprep.subr.mxu0 0.0
        %548 = vmatpush1.msra.mxu0 0.0
        %549 = vmatprep.subr.mxu0 0.0
        %550 = vmatpush1.msra.mxu0 0.0
        %551 = vmatprep.subr.mxu0 0.0
        %552 = vmatpush1.msra.mxu0 0.0
        %553 = vmatprep.subr.mxu0 0.0
        %554 = vmatpush1.msra.mxu0 0.0
        %555 = vmatprep.subr.mxu0 0.0
        %556 = vmatpush1.msra.mxu0 0.0
        %557 = vmatprep.subr.mxu0 0.0
        %558 = vmatpush1.msra.mxu0 0.0
        %559 = vmatprep.subr.mxu0 0.0
        %560 = vmatpush1.msra.mxu0 0.0
        %561 = vmatprep.subr.mxu0 0.0
        %562 = vmatpush1.msra.mxu0 0.0
        %563 = vmatprep.subr.mxu0 0.0
        %564 = vmatpush1.msra.mxu0 0.0
        %565 = vmatprep.subr.mxu0 0.0
        %566 = vmatpush1.msra.mxu0 0.0
        %567 = vmatprep.subr.mxu0 0.0
        %568 = vmatpush1.msra.mxu0 0.0
        %569 = vmatprep.subr.mxu0 0.0
        %570 = vmatpush1.msra.mxu0 0.0
        %571 = vmatprep.subr.mxu0 0.0
        %572 = vmatpush1.msra.mxu0 0.0
        %573 = vmatprep.mubr.f32.mxu0 0.0
        %574 = vmatmul.mubr.f32.gmra.mrb[0].mxu0 %v410
        %v575 = vpop.f32.mrb[0].mxu0
        %v576 = vadd.f32 %v339, %v575
        %v577 = vpop.f32.mrb[0].mxu0
        %578 = vmatprep.mubr.f32.mxu0 0.0
        %579 = vmatmul.mubr.f32.gmra.mrb[0].mxu0 %v413
        %v580 = vpop.f32.mrb[0].mxu0
        %v581 = vadd.f32 %v339, %v580
        %v582 = vpop.f32.mrb[0].mxu0
        %583 = vmatprep.mubr.f32.mxu0 0.0
        %584 = vmatmul.mubr.f32.gmra.mrb[0].mxu0 %v416
        %v585 = vpop.f32.mrb[0].mxu0
        %v586 = vadd.f32 %v339, %v585
        %v587 = vpop.f32.mrb[0].mxu0
        %588 = vmatprep.mubr.f32.mxu0 0.0
        %589 = vmatmul.mubr.f32.gmra.mrb[0].mxu0 %v419
        %v590 = vpop.f32.mrb[0].mxu0
        %v591 = vadd.f32 %v339, %v590
        %v592 = vpop.f32.mrb[0].mxu0
        %593 = vmatprep.mubr.f32.mxu0 0.0
        %594 = vmatmul.mubr.f32.gmra.mrb[0].mxu0 %v422
        %v595 = vpop.f32.mrb[0].mxu0
        %v596 = vadd.f32 %v339, %v595
        %v597 = vpop.f32.mrb[0].mxu0
        %598 = vmatprep.mubr.f32.mxu0 0.0
        %599 = vmatmul.mubr.f32.gmra.mrb[0].mxu0 %v425
        %v600 = vpop.f32.mrb[0].mxu0
        %v601 = vadd.f32 %v339, %v600
        %v602 = vpop.f32.mrb[0].mxu0
        %603 = vmatprep.mubr.f32.mxu0 0.0
        %604 = vmatmul.mubr.f32.gmra.mrb[0].mxu0 %v428
        %v605 = vpop.f32.mrb[0].mxu0
        %v606 = vadd.f32 %v339, %v605
        %v607 = vpop.f32.mrb[0].mxu0
        %608 = vmatprep.mubr.f32.mxu0 0.0
        %609 = vmatmul.mubr.f32.gmra.mrb[0].mxu0 %v431
        %v610 = vpop.f32.mrb[0].mxu0
        %v611 = vadd.f32 %v339, %v610
        %v612 = vpop.f32.mrb[0].mxu0
        %613 = vmatprep.mubr.f32.mxu0 0.0
        %614 = vmatmul.mubr.f32.gmra.mrb[0].mxu0 %v434
        %v615 = vpop.f32.mrb[0].mxu0
        %v616 = vadd.f32 %v339, %v615
        %v617 = vpop.f32.mrb[0].mxu0
        %618 = vmatprep.mubr.f32.mxu0 0.0
        %619 = vmatmul.mubr.f32.gmra.mrb[0].mxu0 %v437
        %v620 = vpop.f32.mrb[0].mxu0
        %v621 = vadd.f32 %v339, %v620
        %v622 = vpop.f32.mrb[0].mxu0
        %623 = vmatprep.mubr.f32.mxu0 0.0
        %624 = vmatmul.mubr.f32.gmra.mrb[0].mxu0 %v440
        %v625 = vpop.f32.mrb[0].mxu0
        %v626 = vadd.f32 %v339, %v625
        %v627 = vpop.f32.mrb[0].mxu0
        %628 = vmatprep.mubr.f32.mxu0 0.0
        %629 = vmatmul.mubr.f32.gmra.mrb[0].mxu0 %v443
        %v630 = vpop.f32.mrb[0].mxu0
        %v631 = vadd.f32 %v339, %v630
        %v632 = vpop.f32.mrb[0].mxu0
        %633 = vmatprep.mubr.f32.mxu0 0.0
        %634 = vmatmul.mubr.f32.gmra.mrb[0].mxu0 %v446
        %v635 = vpop.f32.mrb[0].mxu0
        %v636 = vadd.f32 %v339, %v635
        %v637 = vpop.f32.mrb[0].mxu0
        %638 = vmatprep.mubr.f32.mxu0 0.0
        %639 = vmatmul.mubr.f32.gmra.mrb[0].mxu0 %v449
        %v640 = vpop.f32.mrb[0].mxu0
        %v641 = vadd.f32 %v339, %v640
        %v642 = vpop.f32.mrb[0].mxu0
        %643 = vmatprep.mubr.f32.mxu0 0.0
        %644 = vmatmul.mubr.f32.gmra.mrb[0].mxu0 %v452
        %v645 = vpop.f32.mrb[0].mxu0
        %v646 = vadd.f32 %v339, %v645
        %v647 = vpop.f32.mrb[0].mxu0
        %648 = vmatprep.mubr.f32.mxu0 0.0
        %649 = vmatmul.mubr.f32.gmra.mrb[0].mxu0 %v455
        %v650 = vpop.f32.mrb[0].mxu0
        %v651 = vadd.f32 %v339, %v650
        %v652 = vpop.f32.mrb[0].mxu0
        %653 = vmatprep.mubr.f32.mxu0 0.0
        %654 = vmatmul.mubr.f32.gmra.mrb[0].mxu0 %v458
        %v655 = vpop.f32.mrb[0].mxu0
        %v656 = vadd.f32 %v339, %v655
        %v657 = vpop.f32.mrb[0].mxu0
        %658 = vmatprep.mubr.f32.mxu0 0.0
        %659 = vmatmul.mubr.f32.gmra.mrb[0].mxu0 %v461
        %v660 = vpop.f32.mrb[0].mxu0
        %v661 = vadd.f32 %v339, %v660
        %v662 = vpop.f32.mrb[0].mxu0
        %663 = vmatprep.mubr.f32.mxu0 0.0
        %664 = vmatmul.mubr.f32.gmra.mrb[0].mxu0 %v464
        %v665 = vpop.f32.mrb[0].mxu0
        %v666 = vadd.f32 %v339, %v665
        %v667 = vpop.f32.mrb[0].mxu0
        %668 = vmatprep.mubr.f32.mxu0 0.0
        %669 = vmatmul.mubr.f32.gmra.mrb[0].mxu0 %v467
        %v670 = vpop.f32.mrb[0].mxu0
        %v671 = vadd.f32 %v339, %v670
        %v672 = vpop.f32.mrb[0].mxu0
        %673 = vmatprep.mubr.f32.mxu0 0.0
        %674 = vmatmul.mubr.f32.gmra.mrb[0].mxu0 %v470
        %v675 = vpop.f32.mrb[0].mxu0
        %v676 = vadd.f32 %v339, %v675
        %v677 = vpop.f32.mrb[0].mxu0
        %678 = vmatprep.mubr.f32.mxu0 0.0
        %679 = vmatmul.mubr.f32.gmra.mrb[0].mxu0 %v473
        %v680 = vpop.f32.mrb[0].mxu0
        %v681 = vadd.f32 %v339, %v680
        %v682 = vpop.f32.mrb[0].mxu0
        %683 = vmatprep.mubr.f32.mxu0 0.0
        %684 = vmatmul.mubr.f32.gmra.mrb[0].mxu0 %v476
        %v685 = vpop.f32.mrb[0].mxu0
        %v686 = vadd.f32 %v339, %v685
        %v687 = vpop.f32.mrb[0].mxu0
        %688 = vmatprep.mubr.f32.mxu0 0.0
        %689 = vmatmul.mubr.f32.gmra.mrb[0].mxu0 %v479
        %v690 = vpop.f32.mrb[0].mxu0
        %v691 = vadd.f32 %v339, %v690
        %v692 = vpop.f32.mrb[0].mxu0
        %693 = vmatprep.mubr.f32.mxu0 0.0
        %694 = vmatmul.mubr.f32.gmra.mrb[0].mxu0 %v482
        %v695 = vpop.f32.mrb[0].mxu0
        %v696 = vadd.f32 %v339, %v695
        %v697 = vpop.f32.mrb[0].mxu0
        %698 = vmatprep.mubr.f32.mxu0 0.0
        %699 = vmatmul.mubr.f32.gmra.mrb[0].mxu0 %v485
        %v700 = vpop.f32.mrb[0].mxu0
        %v701 = vadd.f32 %v339, %v700
        %v702 = vpop.f32.mrb[0].mxu0
        %703 = vmatprep.mubr.f32.mxu0 0.0
        %704 = vmatmul.mubr.f32.gmra.mrb[0].mxu0 %v488
        %v705 = vpop.f32.mrb[0].mxu0
        %v706 = vadd.f32 %v339, %v705
        %v707 = vpop.f32.mrb[0].mxu0
        %708 = vmatprep.mubr.f32.mxu0 0.0
        %709 = vmatmul.mubr.f32.gmra.mrb[0].mxu0 %v491
        %v710 = vpop.f32.mrb[0].mxu0
        %v711 = vadd.f32 %v339, %v710
        %v712 = vpop.f32.mrb[0].mxu0
        %713 = vmatprep.mubr.f32.mxu0 0.0
        %714 = vmatmul.mubr.f32.gmra.mrb[0].mxu0 %v494
        %v715 = vpop.f32.mrb[0].mxu0
        %v716 = vadd.f32 %v339, %v715
        %v717 = vpop.f32.mrb[0].mxu0
        %718 = vmatprep.mubr.f32.mxu0 0.0
        %719 = vmatmul.mubr.f32.gmra.mrb[0].mxu0 %v497
        %v720 = vpop.f32.mrb[0].mxu0
        %v721 = vadd.f32 %v339, %v720
        %v722 = vpop.f32.mrb[0].mxu0
        %723 = vmatprep.mubr.f32.mxu0 0.0
        %724 = vmatmul.mubr.f32.gmra.mrb[0].mxu0 %v500
        %v725 = vpop.f32.mrb[0].mxu0
        %v726 = vadd.f32 %v339, %v725
        %v727 = vpop.f32.mrb[0].mxu0
        %728 = vmatprep.mubr.f32.mxu0 0.0
        %729 = vmatmul.mubr.f32.gmra.mrb[0].mxu0 %v503
        %v730 = vpop.f32.mrb[0].mxu0
        %v731 = vadd.f32 %v339, %v730
        %v732 = vpop.f32.mrb[0].mxu0
        %733 = vdwg.mxu0
        %v734 = vmax.f32 %v576, 0.0
        %v735 = vmax.f32 %v581, 0.0
        %v736 = vmax.f32 %v586, 0.0
        %v737 = vmax.f32 %v591, 0.0
        %v738 = vmax.f32 %v596, 0.0
        %v739 = vmax.f32 %v601, 0.0
        %v740 = vmax.f32 %v606, 0.0
        %v741 = vmax.f32 %v611, 0.0
        %v742 = vmax.f32 %v616, 0.0
        %v743 = vmax.f32 %v621, 0.0
        %v744 = vmax.f32 %v626, 0.0
        %v745 = vmax.f32 %v631, 0.0
        %v746 = vmax.f32 %v636, 0.0
        %v747 = vmax.f32 %v641, 0.0
        %v748 = vmax.f32 %v646, 0.0
        %v749 = vmax.f32 %v651, 0.0
        %v750 = vmax.f32 %v656, 0.0
        %v751 = vmax.f32 %v661, 0.0
        %v752 = vmax.f32 %v666, 0.0
        %v753 = vmax.f32 %v671, 0.0
        %v754 = vmax.f32 %v676, 0.0
        %v755 = vmax.f32 %v681, 0.0
        %v756 = vmax.f32 %v686, 0.0
        %v757 = vmax.f32 %v691, 0.0
        %v758 = vmax.f32 %v696, 0.0
        %v759 = vmax.f32 %v701, 0.0
        %v760 = vmax.f32 %v706, 0.0
        %v761 = vmax.f32 %v711, 0.0
        %v762 = vmax.f32 %v716, 0.0
        %v763 = vmax.f32 %v721, 0.0
        %v764 = vmax.f32 %v726, 0.0
        %v765 = vmax.f32 %v731, 0.0
        %v766 = vadd.f32 %v734, %v735
        %v767 = vadd.f32 %v766, %v736
        %v768 = vadd.f32 %v767, %v737
        %v769 = vadd.f32 %v768, %v738
        %v770 = vadd.f32 %v769, %v739
        %v771 = vadd.f32 %v770, %v740
        %v772 = vadd.f32 %v771, %v741
        %v773 = vadd.f32 %v772, %v742
        %v774 = vadd.f32 %v773, %v743
        %v775 = vadd.f32 %v774, %v744
        %v776 = vadd.f32 %v775, %v745
        %v777 = vadd.f32 %v776, %v746
        %v778 = vadd.f32 %v777, %v747
        %v779 = vadd.f32 %v778, %v748
        %v780 = vadd.f32 %v779, %v749
        %v781 = vadd.f32 %v780, %v750
        %v782 = vadd.f32 %v781, %v751
        %v783 = vadd.f32 %v782, %v752
        %v784 = vadd.f32 %v783, %v753
        %v785 = vadd.f32 %v784, %v754
        %v786 = vadd.f32 %v785, %v755
        %v787 = vadd.f32 %v786, %v756
        %v788 = vadd.f32 %v787, %v757
        %v789 = vadd.f32 %v788, %v758
        %v790 = vadd.f32 %v789, %v759
        %v791 = vadd.f32 %v790, %v760
        %v792 = vadd.f32 %v791, %v761
        %v793 = vadd.f32 %v792, %v762
        %v794 = vadd.f32 %v793, %v763
        %v795 = vadd.f32 %v794, %v764
        %v796 = vadd.f32 %v795, %v765
        %v797 = vrot.slane %v796, 4
        %v798 = vadd.f32 %v796, %v797
        %v799 = vrot.slane %v798, 2
        %v800 = vadd.f32 %v798, %v799
        %v801 = vrot.slane %v800, 1
        %v802 = vadd.f32 %v800, %v801
        %v803 = vrcp.pop 256.0
        %v804 = vmul.f32 %v802, %v803
        %805 = vst [vmem:[#allocation2] sm:$0x1] %v804
        %s806 = scalar_lea.vmem %s331, 8
        %v807 = vld [vmem:[%s806] sm:$0x77]
        %v809 = vcombine.high %v807, %v807
        %811 = vxpose.xlu0.b32.start [1/16] %v807, 128
        %812 = vxpose.xlu0.b32.cont [2/16] 0.0, 128
        %813 = vxpose.xlu0.b32.cont [3/16] 0.0, 128
        %814 = vxpose.xlu0.b32.cont [4/16] 0.0, 128
        %815 = vxpose.xlu0.b32.cont [5/16] 0.0, 128
        %816 = vxpose.xlu0.b32.cont [6/16] 0.0, 128
        %817 = vxpose.xlu0.b32.cont [7/16] 0.0, 128
        %818 = vxpose.xlu0.b32.cont [8/16] 0.0, 128
        %819 = vxpose.xlu0.b32.cont [9/16] 0.0, 128
        %820 = vxpose.xlu0.b32.cont [10/16] 0.0, 128
        %821 = vxpose.xlu0.b32.cont [11/16] 0.0, 128
        %822 = vxpose.xlu0.b32.cont [12/16] 0.0, 128
        %823 = vxpose.xlu0.b32.cont [13/16] 0.0, 128
        %824 = vxpose.xlu0.b32.cont [14/16] 0.0, 128
        %825 = vxpose.xlu0.b32.cont [15/16] 0.0, 128
        %826 = vxpose.xlu0.b32.end [16/16] 0.0, 128
        %v827 = vpop.trf.xlu0
        %v828 = vpop.trf.xlu0
        %v829 = vpop.trf.xlu0
        %v830 = vpop.trf.xlu0
        %v831 = vpop.trf.xlu0
        %v832 = vpop.trf.xlu0
        %v833 = vpop.trf.xlu0
        %v834 = vpop.trf.xlu0
        %v835 = vpop.trf.xlu0
        %v836 = vpop.trf.xlu0
        %v837 = vpop.trf.xlu0
        %v838 = vpop.trf.xlu0
        %v839 = vpop.trf.xlu0
        %v840 = vpop.trf.xlu0
        %v841 = vpop.trf.xlu0
        %v842 = vpop.trf.xlu0
        %843 = vxpose.xlu0.b32.start [1/16] %v809, 128
        %844 = vxpose.xlu0.b32.cont [2/16] 0.0, 128
        %845 = vxpose.xlu0.b32.cont [3/16] 0.0, 128
        %846 = vxpose.xlu0.b32.cont [4/16] 0.0, 128
        %847 = vxpose.xlu0.b32.cont [5/16] 0.0, 128
        %848 = vxpose.xlu0.b32.cont [6/16] 0.0, 128
        %849 = vxpose.xlu0.b32.cont [7/16] 0.0, 128
        %850 = vxpose.xlu0.b32.cont [8/16] 0.0, 128
        %851 = vxpose.xlu0.b32.cont [9/16] 0.0, 128
        %852 = vxpose.xlu0.b32.cont [10/16] 0.0, 128
        %853 = vxpose.xlu0.b32.cont [11/16] 0.0, 128
        %854 = vxpose.xlu0.b32.cont [12/16] 0.0, 128
        %855 = vxpose.xlu0.b32.cont [13/16] 0.0, 128
        %856 = vxpose.xlu0.b32.cont [14/16] 0.0, 128
        %857 = vxpose.xlu0.b32.cont [15/16] 0.0, 128
        %858 = vxpose.xlu0.b32.end [16/16] 0.0, 128
        %v859 = vpop.trf.xlu0
        %v860 = vpop.trf.xlu0
        %v861 = vpop.trf.xlu0
        %v862 = vpop.trf.xlu0
        %v863 = vpop.trf.xlu0
        %v864 = vpop.trf.xlu0
        %v865 = vpop.trf.xlu0
        %v866 = vpop.trf.xlu0
        %v867 = vpop.trf.xlu0
        %v868 = vpop.trf.xlu0
        %v869 = vpop.trf.xlu0
        %v870 = vpop.trf.xlu0
        %v871 = vpop.trf.xlu0
        %v872 = vpop.trf.xlu0
        %v873 = vpop.trf.xlu0
        %v874 = vpop.trf.xlu0
        %v876 = vsel %vm408, %v827, 0
        %v879 = vsel %vm408, %v828, 0
        %v882 = vsel %vm408, %v829, 0
        %v885 = vsel %vm408, %v830, 0
        %v888 = vsel %vm408, %v831, 0
        %v891 = vsel %vm408, %v832, 0
        %v894 = vsel %vm408, %v833, 0
        %v897 = vsel %vm408, %v834, 0
        %v900 = vsel %vm408, %v835, 0
        %v903 = vsel %vm408, %v836, 0
        %v906 = vsel %vm408, %v837, 0
        %v909 = vsel %vm408, %v838, 0
        %v912 = vsel %vm408, %v839, 0
        %v915 = vsel %vm408, %v840, 0
        %v918 = vsel %vm408, %v841, 0
        %v921 = vsel %vm408, %v842, 0
        %v924 = vsel %vm408, %v859, 0
        %v927 = vsel %vm408, %v860, 0
        %v930 = vsel %vm408, %v861, 0
        %v933 = vsel %vm408, %v862, 0
        %v936 = vsel %vm408, %v863, 0
        %v939 = vsel %vm408, %v864, 0
        %v942 = vsel %vm408, %v865, 0
        %v945 = vsel %vm408, %v866, 0
        %v948 = vsel %vm408, %v867, 0
        %v951 = vsel %vm408, %v868, 0
        %v954 = vsel %vm408, %v869, 0
        %v957 = vsel %vm408, %v870, 0
        %v960 = vsel %vm408, %v871, 0
        %v963 = vsel %vm408, %v872, 0
        %v966 = vsel %vm408, %v873, 0
        %v969 = vsel %vm408, %v874, 0
        %971 = vmatprep.subr.mxu0 0.0
        %972 = vmatpush1.msra.mxu0 %v507
        %973 = vmatprep.subr.mxu0 0.0
        %974 = vmatpush1.msra.mxu0 0.0
        %975 = vmatprep.subr.mxu0 0.0
        %976 = vmatpush1.msra.mxu0 0.0
        %977 = vmatprep.subr.mxu0 0.0
        %978 = vmatpush1.msra.mxu0 0.0
        %979 = vmatprep.subr.mxu0 0.0
        %980 = vmatpush1.msra.mxu0 0.0
        %981 = vmatprep.subr.mxu0 0.0
        %982 = vmatpush1.msra.mxu0 0.0
        %983 = vmatprep.subr.mxu0 0.0
        %984 = vmatpush1.msra.mxu0 0.0
        %985 = vmatprep.subr.mxu0 0.0
        %986 = vmatpush1.msra.mxu0 0.0
        %987 = vmatprep.subr.mxu0 0.0
        %988 = vmatpush1.msra.mxu0 0.0
        %989 = vmatprep.subr.mxu0 0.0
        %990 = vmatpush1.msra.mxu0 0.0
        %991 = vmatprep.subr.mxu0 0.0
        %992 = vmatpush1.msra.mxu0 0.0
        %993 = vmatprep.subr.mxu0 0.0
        %994 = vmatpush1.msra.mxu0 0.0
        %995 = vmatprep.subr.mxu0 0.0
        %996 = vmatpush1.msra.mxu0 0.0
        %997 = vmatprep.subr.mxu0 0.0
        %998 = vmatpush1.msra.mxu0 0.0
        %999 = vmatprep.subr.mxu0 0.0
        %1000 = vmatpush1.msra.mxu0 0.0
        %1001 = vmatprep.subr.mxu0 0.0
        %1002 = vmatpush1.msra.mxu0 0.0
        %1003 = vmatprep.subr.mxu0 0.0
        %1004 = vmatpush1.msra.mxu0 0.0
        %1005 = vmatprep.subr.mxu0 0.0
        %1006 = vmatpush1.msra.mxu0 0.0
        %1007 = vmatprep.subr.mxu0 0.0
        %1008 = vmatpush1.msra.mxu0 0.0
        %1009 = vmatprep.subr.mxu0 0.0
        %1010 = vmatpush1.msra.mxu0 0.0
        %1011 = vmatprep.subr.mxu0 0.0
        %1012 = vmatpush1.msra.mxu0 0.0
        %1013 = vmatprep.subr.mxu0 0.0
        %1014 = vmatpush1.msra.mxu0 0.0
        %1015 = vmatprep.subr.mxu0 0.0
        %1016 = vmatpush1.msra.mxu0 0.0
        %1017 = vmatprep.subr.mxu0 0.0
        %1018 = vmatpush1.msra.mxu0 0.0
        %1019 = vmatprep.subr.mxu0 0.0
        %1020 = vmatpush1.msra.mxu0 0.0
        %1021 = vmatprep.subr.mxu0 0.0
        %1022 = vmatpush1.msra.mxu0 0.0
        %1023 = vmatprep.subr.mxu0 0.0
        %1024 = vmatpush1.msra.mxu0 0.0
        %1025 = vmatprep.subr.mxu0 0.0
        %1026 = vmatpush1.msra.mxu0 0.0
        %1027 = vmatprep.subr.mxu0 0.0
        %1028 = vmatpush1.msra.mxu0 0.0
        %1029 = vmatprep.subr.mxu0 0.0
        %1030 = vmatpush1.msra.mxu0 0.0
        %1031 = vmatprep.subr.mxu0 0.0
        %1032 = vmatpush1.msra.mxu0 0.0
        %1033 = vmatprep.subr.mxu0 0.0
        %1034 = vmatpush1.msra.mxu0 0.0
        %1035 = vmatprep.mubr.f32.mxu0 0.0
        %1036 = vmatmul.mubr.f32.gmra.mrb[0].mxu0 %v876
        %v1037 = vpop.f32.mrb[0].mxu0
        %v1038 = vadd.f32 %v339, %v1037
        %v1039 = vpop.f32.mrb[0].mxu0
        %1040 = vmatprep.mubr.f32.mxu0 0.0
        %1041 = vmatmul.mubr.f32.gmra.mrb[0].mxu0 %v879
        %v1042 = vpop.f32.mrb[0].mxu0
        %v1043 = vadd.f32 %v339, %v1042
        %v1044 = vpop.f32.mrb[0].mxu0
        %1045 = vmatprep.mubr.f32.mxu0 0.0
        %1046 = vmatmul.mubr.f32.gmra.mrb[0].mxu0 %v882
        %v1047 = vpop.f32.mrb[0].mxu0
        %v1048 = vadd.f32 %v339, %v1047
        %v1049 = vpop.f32.mrb[0].mxu0
        %1050 = vmatprep.mubr.f32.mxu0 0.0
        %1051 = vmatmul.mubr.f32.gmra.mrb[0].mxu0 %v885
        %v1052 = vpop.f32.mrb[0].mxu0
        %v1053 = vadd.f32 %v339, %v1052
        %v1054 = vpop.f32.mrb[0].mxu0
        %1055 = vmatprep.mubr.f32.mxu0 0.0
        %1056 = vmatmul.mubr.f32.gmra.mrb[0].mxu0 %v888
        %v1057 = vpop.f32.mrb[0].mxu0
        %v1058 = vadd.f32 %v339, %v1057
        %v1059 = vpop.f32.mrb[0].mxu0
        %1060 = vmatprep.mubr.f32.mxu0 0.0
        %1061 = vmatmul.mubr.f32.gmra.mrb[0].mxu0 %v891
        %v1062 = vpop.f32.mrb[0].mxu0
        %v1063 = vadd.f32 %v339, %v1062
        %v1064 = vpop.f32.mrb[0].mxu0
        %1065 = vmatprep.mubr.f32.mxu0 0.0
        %1066 = vmatmul.mubr.f32.gmra.mrb[0].mxu0 %v894
        %v1067 = vpop.f32.mrb[0].mxu0
        %v1068 = vadd.f32 %v339, %v1067
        %v1069 = vpop.f32.mrb[0].mxu0
        %1070 = vmatprep.mubr.f32.mxu0 0.0
        %1071 = vmatmul.mubr.f32.gmra.mrb[0].mxu0 %v897
        %v1072 = vpop.f32.mrb[0].mxu0
        %v1073 = vadd.f32 %v339, %v1072
        %v1074 = vpop.f32.mrb[0].mxu0
        %1075 = vmatprep.mubr.f32.mxu0 0.0
        %1076 = vmatmul.mubr.f32.gmra.mrb[0].mxu0 %v900
        %v1077 = vpop.f32.mrb[0].mxu0
        %v1078 = vadd.f32 %v339, %v1077
        %v1079 = vpop.f32.mrb[0].mxu0
        %1080 = vmatprep.mubr.f32.mxu0 0.0
        %1081 = vmatmul.mubr.f32.gmra.mrb[0].mxu0 %v903
        %v1082 = vpop.f32.mrb[0].mxu0
        %v1083 = vadd.f32 %v339, %v1082
        %v1084 = vpop.f32.mrb[0].mxu0
        %1085 = vmatprep.mubr.f32.mxu0 0.0
        %1086 = vmatmul.mubr.f32.gmra.mrb[0].mxu0 %v906
        %v1087 = vpop.f32.mrb[0].mxu0
        %v1088 = vadd.f32 %v339, %v1087
        %v1089 = vpop.f32.mrb[0].mxu0
        %1090 = vmatprep.mubr.f32.mxu0 0.0
        %1091 = vmatmul.mubr.f32.gmra.mrb[0].mxu0 %v909
        %v1092 = vpop.f32.mrb[0].mxu0
        %v1093 = vadd.f32 %v339, %v1092
        %v1094 = vpop.f32.mrb[0].mxu0
        %1095 = vmatprep.mubr.f32.mxu0 0.0
        %1096 = vmatmul.mubr.f32.gmra.mrb[0].mxu0 %v912
        %v1097 = vpop.f32.mrb[0].mxu0
        %v1098 = vadd.f32 %v339, %v1097
        %v1099 = vpop.f32.mrb[0].mxu0
        %1100 = vmatprep.mubr.f32.mxu0 0.0
        %1101 = vmatmul.mubr.f32.gmra.mrb[0].mxu0 %v915
        %v1102 = vpop.f32.mrb[0].mxu0
        %v1103 = vadd.f32 %v339, %v1102
        %v1104 = vpop.f32.mrb[0].mxu0
        %1105 = vmatprep.mubr.f32.mxu0 0.0
        %1106 = vmatmul.mubr.f32.gmra.mrb[0].mxu0 %v918
        %v1107 = vpop.f32.mrb[0].mxu0
        %v1108 = vadd.f32 %v339, %v1107
        %v1109 = vpop.f32.mrb[0].mxu0
        %1110 = vmatprep.mubr.f32.mxu0 0.0
        %1111 = vmatmul.mubr.f32.gmra.mrb[0].mxu0 %v921
        %v1112 = vpop.f32.mrb[0].mxu0
        %v1113 = vadd.f32 %v339, %v1112
        %v1114 = vpop.f32.mrb[0].mxu0
        %1115 = vmatprep.mubr.f32.mxu0 0.0
        %1116 = vmatmul.mubr.f32.gmra.mrb[0].mxu0 %v924
        %v1117 = vpop.f32.mrb[0].mxu0
        %v1118 = vadd.f32 %v339, %v1117
        %v1119 = vpop.f32.mrb[0].mxu0
        %1120 = vmatprep.mubr.f32.mxu0 0.0
        %1121 = vmatmul.mubr.f32.gmra.mrb[0].mxu0 %v927
        %v1122 = vpop.f32.mrb[0].mxu0
        %v1123 = vadd.f32 %v339, %v1122
        %v1124 = vpop.f32.mrb[0].mxu0
        %1125 = vmatprep.mubr.f32.mxu0 0.0
        %1126 = vmatmul.mubr.f32.gmra.mrb[0].mxu0 %v930
        %v1127 = vpop.f32.mrb[0].mxu0
        %v1128 = vadd.f32 %v339, %v1127
        %v1129 = vpop.f32.mrb[0].mxu0
        %1130 = vmatprep.mubr.f32.mxu0 0.0
        %1131 = vmatmul.mubr.f32.gmra.mrb[0].mxu0 %v933
        %v1132 = vpop.f32.mrb[0].mxu0
        %v1133 = vadd.f32 %v339, %v1132
        %v1134 = vpop.f32.mrb[0].mxu0
        %1135 = vmatprep.mubr.f32.mxu0 0.0
        %1136 = vmatmul.mubr.f32.gmra.mrb[0].mxu0 %v936
        %v1137 = vpop.f32.mrb[0].mxu0
        %v1138 = vadd.f32 %v339, %v1137
        %v1139 = vpop.f32.mrb[0].mxu0
        %1140 = vmatprep.mubr.f32.mxu0 0.0
        %1141 = vmatmul.mubr.f32.gmra.mrb[0].mxu0 %v939
        %v1142 = vpop.f32.mrb[0].mxu0
        %v1143 = vadd.f32 %v339, %v1142
        %v1144 = vpop.f32.mrb[0].mxu0
        %1145 = vmatprep.mubr.f32.mxu0 0.0
        %1146 = vmatmul.mubr.f32.gmra.mrb[0].mxu0 %v942
        %v1147 = vpop.f32.mrb[0].mxu0
        %v1148 = vadd.f32 %v339, %v1147
        %v1149 = vpop.f32.mrb[0].mxu0
        %1150 = vmatprep.mubr.f32.mxu0 0.0
        %1151 = vmatmul.mubr.f32.gmra.mrb[0].mxu0 %v945
        %v1152 = vpop.f32.mrb[0].mxu0
        %v1153 = vadd.f32 %v339, %v1152
        %v1154 = vpop.f32.mrb[0].mxu0
        %1155 = vmatprep.mubr.f32.mxu0 0.0
        %1156 = vmatmul.mubr.f32.gmra.mrb[0].mxu0 %v948
        %v1157 = vpop.f32.mrb[0].mxu0
        %v1158 = vadd.f32 %v339, %v1157
        %v1159 = vpop.f32.mrb[0].mxu0
        %1160 = vmatprep.mubr.f32.mxu0 0.0
        %1161 = vmatmul.mubr.f32.gmra.mrb[0].mxu0 %v951
        %v1162 = vpop.f32.mrb[0].mxu0
        %v1163 = vadd.f32 %v339, %v1162
        %v1164 = vpop.f32.mrb[0].mxu0
        %1165 = vmatprep.mubr.f32.mxu0 0.0
        %1166 = vmatmul.mubr.f32.gmra.mrb[0].mxu0 %v954
        %v1167 = vpop.f32.mrb[0].mxu0
        %v1168 = vadd.f32 %v339, %v1167
        %v1169 = vpop.f32.mrb[0].mxu0
        %1170 = vmatprep.mubr.f32.mxu0 0.0
        %1171 = vmatmul.mubr.f32.gmra.mrb[0].mxu0 %v957
        %v1172 = vpop.f32.mrb[0].mxu0
        %v1173 = vadd.f32 %v339, %v1172
        %v1174 = vpop.f32.mrb[0].mxu0
        %1175 = vmatprep.mubr.f32.mxu0 0.0
        %1176 = vmatmul.mubr.f32.gmra.mrb[0].mxu0 %v960
        %v1177 = vpop.f32.mrb[0].mxu0
        %v1178 = vadd.f32 %v339, %v1177
        %v1179 = vpop.f32.mrb[0].mxu0
        %1180 = vmatprep.mubr.f32.mxu0 0.0
        %1181 = vmatmul.mubr.f32.gmra.mrb[0].mxu0 %v963
        %v1182 = vpop.f32.mrb[0].mxu0
        %v1183 = vadd.f32 %v339, %v1182
        %v1184 = vpop.f32.mrb[0].mxu0
        %1185 = vmatprep.mubr.f32.mxu0 0.0
        %1186 = vmatmul.mubr.f32.gmra.mrb[0].mxu0 %v966
        %v1187 = vpop.f32.mrb[0].mxu0
        %v1188 = vadd.f32 %v339, %v1187
        %v1189 = vpop.f32.mrb[0].mxu0
        %1190 = vmatprep.mubr.f32.mxu0 0.0
        %1191 = vmatmul.mubr.f32.gmra.mrb[0].mxu0 %v969
        %v1192 = vpop.f32.mrb[0].mxu0
        %v1193 = vadd.f32 %v339, %v1192
        %v1194 = vpop.f32.mrb[0].mxu0
        %1195 = vdwg.mxu0
        %v1196 = vmax.f32 %v1038, 0.0
        %v1197 = vmax.f32 %v1043, 0.0
        %v1198 = vmax.f32 %v1048, 0.0
        %v1199 = vmax.f32 %v1053, 0.0
        %v1200 = vmax.f32 %v1058, 0.0
        %v1201 = vmax.f32 %v1063, 0.0
        %v1202 = vmax.f32 %v1068, 0.0
        %v1203 = vmax.f32 %v1073, 0.0
        %v1204 = vmax.f32 %v1078, 0.0
        %v1205 = vmax.f32 %v1083, 0.0
        %v1206 = vmax.f32 %v1088, 0.0
        %v1207 = vmax.f32 %v1093, 0.0
        %v1208 = vmax.f32 %v1098, 0.0
        %v1209 = vmax.f32 %v1103, 0.0
        %v1210 = vmax.f32 %v1108, 0.0
        %v1211 = vmax.f32 %v1113, 0.0
        %v1212 = vmax.f32 %v1118, 0.0
        %v1213 = vmax.f32 %v1123, 0.0
        %v1214 = vmax.f32 %v1128, 0.0
        %v1215 = vmax.f32 %v1133, 0.0
        %v1216 = vmax.f32 %v1138, 0.0
        %v1217 = vmax.f32 %v1143, 0.0
        %v1218 = vmax.f32 %v1148, 0.0
        %v1219 = vmax.f32 %v1153, 0.0
        %v1220 = vmax.f32 %v1158, 0.0
        %v1221 = vmax.f32 %v1163, 0.0
        %v1222 = vmax.f32 %v1168, 0.0
        %v1223 = vmax.f32 %v1173, 0.0
        %v1224 = vmax.f32 %v1178, 0.0
        %v1225 = vmax.f32 %v1183, 0.0
        %v1226 = vmax.f32 %v1188, 0.0
        %v1227 = vmax.f32 %v1193, 0.0
        %v1228 = vadd.f32 %v1196, %v1197
        %v1229 = vadd.f32 %v1228, %v1198
        %v1230 = vadd.f32 %v1229, %v1199
        %v1231 = vadd.f32 %v1230, %v1200
        %v1232 = vadd.f32 %v1231, %v1201
        %v1233 = vadd.f32 %v1232, %v1202
        %v1234 = vadd.f32 %v1233, %v1203
        %v1235 = vadd.f32 %v1234, %v1204
        %v1236 = vadd.f32 %v1235, %v1205
        %v1237 = vadd.f32 %v1236, %v1206
        %v1238 = vadd.f32 %v1237, %v1207
        %v1239 = vadd.f32 %v1238, %v1208
        %v1240 = vadd.f32 %v1239, %v1209
        %v1241 = vadd.f32 %v1240, %v1210
        %v1242 = vadd.f32 %v1241, %v1211
        %v1243 = vadd.f32 %v1242, %v1212
        %v1244 = vadd.f32 %v1243, %v1213
        %v1245 = vadd.f32 %v1244, %v1214
        %v1246 = vadd.f32 %v1245, %v1215
        %v1247 = vadd.f32 %v1246, %v1216
        %v1248 = vadd.f32 %v1247, %v1217
        %v1249 = vadd.f32 %v1248, %v1218
        %v1250 = vadd.f32 %v1249, %v1219
        %v1251 = vadd.f32 %v1250, %v1220
        %v1252 = vadd.f32 %v1251, %v1221
        %v1253 = vadd.f32 %v1252, %v1222
        %v1254 = vadd.f32 %v1253, %v1223
        %v1255 = vadd.f32 %v1254, %v1224
        %v1256 = vadd.f32 %v1255, %v1225
        %v1257 = vadd.f32 %v1256, %v1226
        %v1258 = vadd.f32 %v1257, %v1227
        %v1259 = vrot.slane %v1258, 4
        %v1260 = vadd.f32 %v1258, %v1259
        %v1261 = vrot.slane %v1260, 2
        %v1262 = vadd.f32 %v1260, %v1261
        %v1263 = vrot.slane %v1262, 1
        %v1264 = vadd.f32 %v1262, %v1263
        %v1265 = vmul.f32 %v1264, %v803
        %1266 = vst [vmem:[#allocation2 + $0x1] sm:$0x1] %v1265
        %s1267 = scalar_lea.vmem %s331, 16
        %v1268 = vld [vmem:[%s1267] sm:$0x77]
        %v1270 = vcombine.high %v1268, %v1268
        %1272 = vxpose.xlu0.b32.start [1/16] %v1268, 128
        %1273 = vxpose.xlu0.b32.cont [2/16] 0.0, 128
        %1274 = vxpose.xlu0.b32.cont [3/16] 0.0, 128
        %1275 = vxpose.xlu0.b32.cont [4/16] 0.0, 128
        %1276 = vxpose.xlu0.b32.cont [5/16] 0.0, 128
        %1277 = vxpose.xlu0.b32.cont [6/16] 0.0, 128
        %1278 = vxpose.xlu0.b32.cont [7/16] 0.0, 128
        %1279 = vxpose.xlu0.b32.cont [8/16] 0.0, 128
        %1280 = vxpose.xlu0.b32.cont [9/16] 0.0, 128
        %1281 = vxpose.xlu0.b32.cont [10/16] 0.0, 128
        %1282 = vxpose.xlu0.b32.cont [11/16] 0.0, 128
        %1283 = vxpose.xlu0.b32.cont [12/16] 0.0, 128
        %1284 = vxpose.xlu0.b32.cont [13/16] 0.0, 128
        %1285 = vxpose.xlu0.b32.cont [14/16] 0.0, 128
        %1286 = vxpose.xlu0.b32.cont [15/16] 0.0, 128
        %1287 = vxpose.xlu0.b32.end [16/16] 0.0, 128
        %v1288 = vpop.trf.xlu0
        %v1289 = vpop.trf.xlu0
        %v1290 = vpop.trf.xlu0
        %v1291 = vpop.trf.xlu0
        %v1292 = vpop.trf.xlu0
        %v1293 = vpop.trf.xlu0
        %v1294 = vpop.trf.xlu0
        %v1295 = vpop.trf.xlu0
        %v1296 = vpop.trf.xlu0
        %v1297 = vpop.trf.xlu0
        %v1298 = vpop.trf.xlu0
        %v1299 = vpop.trf.xlu0
        %v1300 = vpop.trf.xlu0
        %v1301 = vpop.trf.xlu0
        %v1302 = vpop.trf.xlu0
        %v1303 = vpop.trf.xlu0
        %1304 = vxpose.xlu0.b32.start [1/16] %v1270, 128
        %1305 = vxpose.xlu0.b32.cont [2/16] 0.0, 128
        %1306 = vxpose.xlu0.b32.cont [3/16] 0.0, 128
        %1307 = vxpose.xlu0.b32.cont [4/16] 0.0, 128
        %1308 = vxpose.xlu0.b32.cont [5/16] 0.0, 128
        %1309 = vxpose.xlu0.b32.cont [6/16] 0.0, 128
        %1310 = vxpose.xlu0.b32.cont [7/16] 0.0, 128
        %1311 = vxpose.xlu0.b32.cont [8/16] 0.0, 128
        %1312 = vxpose.xlu0.b32.cont [9/16] 0.0, 128
        %1313 = vxpose.xlu0.b32.cont [10/16] 0.0, 128
        %1314 = vxpose.xlu0.b32.cont [11/16] 0.0, 128
        %1315 = vxpose.xlu0.b32.cont [12/16] 0.0, 128
        %1316 = vxpose.xlu0.b32.cont [13/16] 0.0, 128
        %1317 = vxpose.xlu0.b32.cont [14/16] 0.0, 128
        %1318 = vxpose.xlu0.b32.cont [15/16] 0.0, 128
        %1319 = vxpose.xlu0.b32.end [16/16] 0.0, 128
        %v1320 = vpop.trf.xlu0
        %v1321 = vpop.trf.xlu0
        %v1322 = vpop.trf.xlu0
        %v1323 = vpop.trf.xlu0
        %v1324 = vpop.trf.xlu0
        %v1325 = vpop.trf.xlu0
        %v1326 = vpop.trf.xlu0
        %v1327 = vpop.trf.xlu0
        %v1328 = vpop.trf.xlu0
        %v1329 = vpop.trf.xlu0
        %v1330 = vpop.trf.xlu0
        %v1331 = vpop.trf.xlu0
        %v1332 = vpop.trf.xlu0
        %v1333 = vpop.trf.xlu0
        %v1334 = vpop.trf.xlu0
        %v1335 = vpop.trf.xlu0
        %v1337 = vsel %vm408, %v1288, 0
        %v1340 = vsel %vm408, %v1289, 0
        %v1343 = vsel %vm408, %v1290, 0
        %v1346 = vsel %vm408, %v1291, 0
        %v1349 = vsel %vm408, %v1292, 0
        %v1352 = vsel %vm408, %v1293, 0
        %v1355 = vsel %vm408, %v1294, 0
        %v1358 = vsel %vm408, %v1295, 0
        %v1361 = vsel %vm408, %v1296, 0
        %v1364 = vsel %vm408, %v1297, 0
        %v1367 = vsel %vm408, %v1298, 0
        %v1370 = vsel %vm408, %v1299, 0
        %v1373 = vsel %vm408, %v1300, 0
        %v1376 = vsel %vm408, %v1301, 0
        %v1379 = vsel %vm408, %v1302, 0
        %v1382 = vsel %vm408, %v1303, 0
        %v1385 = vsel %vm408, %v1320, 0
        %v1388 = vsel %vm408, %v1321, 0
        %v1391 = vsel %vm408, %v1322, 0
        %v1394 = vsel %vm408, %v1323, 0
        %v1397 = vsel %vm408, %v1324, 0
        %v1400 = vsel %vm408, %v1325, 0
        %v1403 = vsel %vm408, %v1326, 0
        %v1406 = vsel %vm408, %v1327, 0
        %v1409 = vsel %vm408, %v1328, 0
        %v1412 = vsel %vm408, %v1329, 0
        %v1415 = vsel %vm408, %v1330, 0
        %v1418 = vsel %vm408, %v1331, 0
        %v1421 = vsel %vm408, %v1332, 0
        %v1424 = vsel %vm408, %v1333, 0
        %v1427 = vsel %vm408, %v1334, 0
        %v1430 = vsel %vm408, %v1335, 0
        %1432 = vmatprep.subr.mxu0 0.0
        %1433 = vmatpush1.msra.mxu0 %v507
        %1434 = vmatprep.subr.mxu0 0.0
        %1435 = vmatpush1.msra.mxu0 0.0
        %1436 = vmatprep.subr.mxu0 0.0
        %1437 = vmatpush1.msra.mxu0 0.0
        %1438 = vmatprep.subr.mxu0 0.0
        %1439 = vmatpush1.msra.mxu0 0.0
        %1440 = vmatprep.subr.mxu0 0.0
        %1441 = vmatpush1.msra.mxu0 0.0
        %1442 = vmatprep.subr.mxu0 0.0
        %1443 = vmatpush1.msra.mxu0 0.0
        %1444 = vmatprep.subr.mxu0 0.0
        %1445 = vmatpush1.msra.mxu0 0.0
        %1446 = vmatprep.subr.mxu0 0.0
        %1447 = vmatpush1.msra.mxu0 0.0
        %1448 = vmatprep.subr.mxu0 0.0
        %1449 = vmatpush1.msra.mxu0 0.0
        %1450 = vmatprep.subr.mxu0 0.0
        %1451 = vmatpush1.msra.mxu0 0.0
        %1452 = vmatprep.subr.mxu0 0.0
        %1453 = vmatpush1.msra.mxu0 0.0
        %1454 = vmatprep.subr.mxu0 0.0
        %1455 = vmatpush1.msra.mxu0 0.0
        %1456 = vmatprep.subr.mxu0 0.0
        %1457 = vmatpush1.msra.mxu0 0.0
        %1458 = vmatprep.subr.mxu0 0.0
        %1459 = vmatpush1.msra.mxu0 0.0
        %1460 = vmatprep.subr.mxu0 0.0
        %1461 = vmatpush1.msra.mxu0 0.0
        %1462 = vmatprep.subr.mxu0 0.0
        %1463 = vmatpush1.msra.mxu0 0.0
        %1464 = vmatprep.subr.mxu0 0.0
        %1465 = vmatpush1.msra.mxu0 0.0
        %1466 = vmatprep.subr.mxu0 0.0
        %1467 = vmatpush1.msra.mxu0 0.0
        %1468 = vmatprep.subr.mxu0 0.0
        %1469 = vmatpush1.msra.mxu0 0.0
        %1470 = vmatprep.subr.mxu0 0.0
        %1471 = vmatpush1.msra.mxu0 0.0
        %1472 = vmatprep.subr.mxu0 0.0
        %1473 = vmatpush1.msra.mxu0 0.0
        %1474 = vmatprep.subr.mxu0 0.0
        %1475 = vmatpush1.msra.mxu0 0.0
        %1476 = vmatprep.subr.mxu0 0.0
        %1477 = vmatpush1.msra.mxu0 0.0
        %1478 = vmatprep.subr.mxu0 0.0
        %1479 = vmatpush1.msra.mxu0 0.0
        %1480 = vmatprep.subr.mxu0 0.0
        %1481 = vmatpush1.msra.mxu0 0.0
        %1482 = vmatprep.subr.mxu0 0.0
        %1483 = vmatpush1.msra.mxu0 0.0
        %1484 = vmatprep.subr.mxu0 0.0
        %1485 = vmatpush1.msra.mxu0 0.0
        %1486 = vmatprep.subr.mxu0 0.0
        %1487 = vmatpush1.msra.mxu0 0.0
        %1488 = vmatprep.subr.mxu0 0.0
        %1489 = vmatpush1.msra.mxu0 0.0
        %1490 = vmatprep.subr.mxu0 0.0
        %1491 = vmatpush1.msra.mxu0 0.0
        %1492 = vmatprep.subr.mxu0 0.0
        %1493 = vmatpush1.msra.mxu0 0.0
        %1494 = vmatprep.subr.mxu0 0.0
        %1495 = vmatpush1.msra.mxu0 0.0
        %1496 = vmatprep.mubr.f32.mxu0 0.0
        %1497 = vmatmul.mubr.f32.gmra.mrb[0].mxu0 %v1337
        %v1498 = vpop.f32.mrb[0].mxu0
        %v1499 = vadd.f32 %v339, %v1498
        %v1500 = vpop.f32.mrb[0].mxu0
        %1501 = vmatprep.mubr.f32.mxu0 0.0
        %1502 = vmatmul.mubr.f32.gmra.mrb[0].mxu0 %v1340
        %v1503 = vpop.f32.mrb[0].mxu0
        %v1504 = vadd.f32 %v339, %v1503
        %v1505 = vpop.f32.mrb[0].mxu0
        %1506 = vmatprep.mubr.f32.mxu0 0.0
        %1507 = vmatmul.mubr.f32.gmra.mrb[0].mxu0 %v1343
        %v1508 = vpop.f32.mrb[0].mxu0
        %v1509 = vadd.f32 %v339, %v1508
        %v1510 = vpop.f32.mrb[0].mxu0
        %1511 = vmatprep.mubr.f32.mxu0 0.0
        %1512 = vmatmul.mubr.f32.gmra.mrb[0].mxu0 %v1346
        %v1513 = vpop.f32.mrb[0].mxu0
        %v1514 = vadd.f32 %v339, %v1513
        %v1515 = vpop.f32.mrb[0].mxu0
        %1516 = vmatprep.mubr.f32.mxu0 0.0
        %1517 = vmatmul.mubr.f32.gmra.mrb[0].mxu0 %v1349
        %v1518 = vpop.f32.mrb[0].mxu0
        %v1519 = vadd.f32 %v339, %v1518
        %v1520 = vpop.f32.mrb[0].mxu0
        %1521 = vmatprep.mubr.f32.mxu0 0.0
        %1522 = vmatmul.mubr.f32.gmra.mrb[0].mxu0 %v1352
        %v1523 = vpop.f32.mrb[0].mxu0
        %v1524 = vadd.f32 %v339, %v1523
        %v1525 = vpop.f32.mrb[0].mxu0
        %1526 = vmatprep.mubr.f32.mxu0 0.0
        %1527 = vmatmul.mubr.f32.gmra.mrb[0].mxu0 %v1355
        %v1528 = vpop.f32.mrb[0].mxu0
        %v1529 = vadd.f32 %v339, %v1528
        %v1530 = vpop.f32.mrb[0].mxu0
        %1531 = vmatprep.mubr.f32.mxu0 0.0
        %1532 = vmatmul.mubr.f32.gmra.mrb[0].mxu0 %v1358
        %v1533 = vpop.f32.mrb[0].mxu0
        %v1534 = vadd.f32 %v339, %v1533
        %v1535 = vpop.f32.mrb[0].mxu0
        %1536 = vmatprep.mubr.f32.mxu0 0.0
        %1537 = vmatmul.mubr.f32.gmra.mrb[0].mxu0 %v1361
        %v1538 = vpop.f32.mrb[0].mxu0
        %v1539 = vadd.f32 %v339, %v1538
        %v1540 = vpop.f32.mrb[0].mxu0
        %1541 = vmatprep.mubr.f32.mxu0 0.0
        %1542 = vmatmul.mubr.f32.gmra.mrb[0].mxu0 %v1364
        %v1543 = vpop.f32.mrb[0].mxu0
        %v1544 = vadd.f32 %v339, %v1543
        %v1545 = vpop.f32.mrb[0].mxu0
        %1546 = vmatprep.mubr.f32.mxu0 0.0
        %1547 = vmatmul.mubr.f32.gmra.mrb[0].mxu0 %v1367
        %v1548 = vpop.f32.mrb[0].mxu0
        %v1549 = vadd.f32 %v339, %v1548
        %v1550 = vpop.f32.mrb[0].mxu0
        %1551 = vmatprep.mubr.f32.mxu0 0.0
        %1552 = vmatmul.mubr.f32.gmra.mrb[0].mxu0 %v1370
        %v1553 = vpop.f32.mrb[0].mxu0
        %v1554 = vadd.f32 %v339, %v1553
        %v1555 = vpop.f32.mrb[0].mxu0
        %1556 = vmatprep.mubr.f32.mxu0 0.0
        %1557 = vmatmul.mubr.f32.gmra.mrb[0].mxu0 %v1373
        %v1558 = vpop.f32.mrb[0].mxu0
        %v1559 = vadd.f32 %v339, %v1558
        %v1560 = vpop.f32.mrb[0].mxu0
        %1561 = vmatprep.mubr.f32.mxu0 0.0
        %1562 = vmatmul.mubr.f32.gmra.mrb[0].mxu0 %v1376
        %v1563 = vpop.f32.mrb[0].mxu0
        %v1564 = vadd.f32 %v339, %v1563
        %v1565 = vpop.f32.mrb[0].mxu0
        %1566 = vmatprep.mubr.f32.mxu0 0.0
        %1567 = vmatmul.mubr.f32.gmra.mrb[0].mxu0 %v1379
        %v1568 = vpop.f32.mrb[0].mxu0
        %v1569 = vadd.f32 %v339, %v1568
        %v1570 = vpop.f32.mrb[0].mxu0
        %1571 = vmatprep.mubr.f32.mxu0 0.0
        %1572 = vmatmul.mubr.f32.gmra.mrb[0].mxu0 %v1382
        %v1573 = vpop.f32.mrb[0].mxu0
        %v1574 = vadd.f32 %v339, %v1573
        %v1575 = vpop.f32.mrb[0].mxu0
        %1576 = vmatprep.mubr.f32.mxu0 0.0
        %1577 = vmatmul.mubr.f32.gmra.mrb[0].mxu0 %v1385
        %v1578 = vpop.f32.mrb[0].mxu0
        %v1579 = vadd.f32 %v339, %v1578
        %v1580 = vpop.f32.mrb[0].mxu0
        %1581 = vmatprep.mubr.f32.mxu0 0.0
        %1582 = vmatmul.mubr.f32.gmra.mrb[0].mxu0 %v1388
        %v1583 = vpop.f32.mrb[0].mxu0
        %v1584 = vadd.f32 %v339, %v1583
        %v1585 = vpop.f32.mrb[0].mxu0
        %1586 = vmatprep.mubr.f32.mxu0 0.0
        %1587 = vmatmul.mubr.f32.gmra.mrb[0].mxu0 %v1391
        %v1588 = vpop.f32.mrb[0].mxu0
        %v1589 = vadd.f32 %v339, %v1588
        %v1590 = vpop.f32.mrb[0].mxu0
        %1591 = vmatprep.mubr.f32.mxu0 0.0
        %1592 = vmatmul.mubr.f32.gmra.mrb[0].mxu0 %v1394
        %v1593 = vpop.f32.mrb[0].mxu0
        %v1594 = vadd.f32 %v339, %v1593
        %v1595 = vpop.f32.mrb[0].mxu0
        %1596 = vmatprep.mubr.f32.mxu0 0.0
        %1597 = vmatmul.mubr.f32.gmra.mrb[0].mxu0 %v1397
        %v1598 = vpop.f32.mrb[0].mxu0
        %v1599 = vadd.f32 %v339, %v1598
        %v1600 = vpop.f32.mrb[0].mxu0
        %1601 = vmatprep.mubr.f32.mxu0 0.0
        %1602 = vmatmul.mubr.f32.gmra.mrb[0].mxu0 %v1400
        %v1603 = vpop.f32.mrb[0].mxu0
        %v1604 = vadd.f32 %v339, %v1603
        %v1605 = vpop.f32.mrb[0].mxu0
        %1606 = vmatprep.mubr.f32.mxu0 0.0
        %1607 = vmatmul.mubr.f32.gmra.mrb[0].mxu0 %v1403
        %v1608 = vpop.f32.mrb[0].mxu0
        %v1609 = vadd.f32 %v339, %v1608
        %v1610 = vpop.f32.mrb[0].mxu0
        %1611 = vmatprep.mubr.f32.mxu0 0.0
        %1612 = vmatmul.mubr.f32.gmra.mrb[0].mxu0 %v1406
        %v1613 = vpop.f32.mrb[0].mxu0
        %v1614 = vadd.f32 %v339, %v1613
        %v1615 = vpop.f32.mrb[0].mxu0
        %1616 = vmatprep.mubr.f32.mxu0 0.0
        %1617 = vmatmul.mubr.f32.gmra.mrb[0].mxu0 %v1409
        %v1618 = vpop.f32.mrb[0].mxu0
        %v1619 = vadd.f32 %v339, %v1618
        %v1620 = vpop.f32.mrb[0].mxu0
        %1621 = vmatprep.mubr.f32.mxu0 0.0
        %1622 = vmatmul.mubr.f32.gmra.mrb[0].mxu0 %v1412
        %v1623 = vpop.f32.mrb[0].mxu0
        %v1624 = vadd.f32 %v339, %v1623
        %v1625 = vpop.f32.mrb[0].mxu0
        %1626 = vmatprep.mubr.f32.mxu0 0.0
        %1627 = vmatmul.mubr.f32.gmra.mrb[0].mxu0 %v1415
        %v1628 = vpop.f32.mrb[0].mxu0
        %v1629 = vadd.f32 %v339, %v1628
        %v1630 = vpop.f32.mrb[0].mxu0
        %1631 = vmatprep.mubr.f32.mxu0 0.0
        %1632 = vmatmul.mubr.f32.gmra.mrb[0].mxu0 %v1418
        %v1633 = vpop.f32.mrb[0].mxu0
        %v1634 = vadd.f32 %v339, %v1633
        %v1635 = vpop.f32.mrb[0].mxu0
        %1636 = vmatprep.mubr.f32.mxu0 0.0
        %1637 = vmatmul.mubr.f32.gmra.mrb[0].mxu0 %v1421
        %v1638 = vpop.f32.mrb[0].mxu0
        %v1639 = vadd.f32 %v339, %v1638
        %v1640 = vpop.f32.mrb[0].mxu0
        %1641 = vmatprep.mubr.f32.mxu0 0.0
        %1642 = vmatmul.mubr.f32.gmra.mrb[0].mxu0 %v1424
        %v1643 = vpop.f32.mrb[0].mxu0
        %v1644 = vadd.f32 %v339, %v1643
        %v1645 = vpop.f32.mrb[0].mxu0
        %1646 = vmatprep.mubr.f32.mxu0 0.0
        %1647 = vmatmul.mubr.f32.gmra.mrb[0].mxu0 %v1427
        %v1648 = vpop.f32.mrb[0].mxu0
        %v1649 = vadd.f32 %v339, %v1648
        %v1650 = vpop.f32.mrb[0].mxu0
        %1651 = vmatprep.mubr.f32.mxu0 0.0
        %1652 = vmatmul.mubr.f32.gmra.mrb[0].mxu0 %v1430
        %v1653 = vpop.f32.mrb[0].mxu0
        %v1654 = vadd.f32 %v339, %v1653
        %v1655 = vpop.f32.mrb[0].mxu0
        %1656 = vdwg.mxu0
        %v1657 = vmax.f32 %v1499, 0.0
        %v1658 = vmax.f32 %v1504, 0.0
        %v1659 = vmax.f32 %v1509, 0.0
        %v1660 = vmax.f32 %v1514, 0.0
        %v1661 = vmax.f32 %v1519, 0.0
        %v1662 = vmax.f32 %v1524, 0.0
        %v1663 = vmax.f32 %v1529, 0.0
        %v1664 = vmax.f32 %v1534, 0.0
        %v1665 = vmax.f32 %v1539, 0.0
        %v1666 = vmax.f32 %v1544, 0.0
        %v1667 = vmax.f32 %v1549, 0.0
        %v1668 = vmax.f32 %v1554, 0.0
        %v1669 = vmax.f32 %v1559, 0.0
        %v1670 = vmax.f32 %v1564, 0.0
        %v1671 = vmax.f32 %v1569, 0.0
        %v1672 = vmax.f32 %v1574, 0.0
        %v1673 = vmax.f32 %v1579, 0.0
        %v1674 = vmax.f32 %v1584, 0.0
        %v1675 = vmax.f32 %v1589, 0.0
        %v1676 = vmax.f32 %v1594, 0.0
        %v1677 = vmax.f32 %v1599, 0.0
        %v1678 = vmax.f32 %v1604, 0.0
        %v1679 = vmax.f32 %v1609, 0.0
        %v1680 = vmax.f32 %v1614, 0.0
        %v1681 = vmax.f32 %v1619, 0.0
        %v1682 = vmax.f32 %v1624, 0.0
        %v1683 = vmax.f32 %v1629, 0.0
        %v1684 = vmax.f32 %v1634, 0.0
        %v1685 = vmax.f32 %v1639, 0.0
        %v1686 = vmax.f32 %v1644, 0.0
        %v1687 = vmax.f32 %v1649, 0.0
        %v1688 = vmax.f32 %v1654, 0.0
        %v1689 = vadd.f32 %v1657, %v1658
        %v1690 = vadd.f32 %v1689, %v1659
        %v1691 = vadd.f32 %v1690, %v1660
        %v1692 = vadd.f32 %v1691, %v1661
        %v1693 = vadd.f32 %v1692, %v1662
        %v1694 = vadd.f32 %v1693, %v1663
        %v1695 = vadd.f32 %v1694, %v1664
        %v1696 = vadd.f32 %v1695, %v1665
        %v1697 = vadd.f32 %v1696, %v1666
        %v1698 = vadd.f32 %v1697, %v1667
        %v1699 = vadd.f32 %v1698, %v1668
        %v1700 = vadd.f32 %v1699, %v1669
        %v1701 = vadd.f32 %v1700, %v1670
        %v1702 = vadd.f32 %v1701, %v1671
        %v1703 = vadd.f32 %v1702, %v1672
        %v1704 = vadd.f32 %v1703, %v1673
        %v1705 = vadd.f32 %v1704, %v1674
        %v1706 = vadd.f32 %v1705, %v1675
        %v1707 = vadd.f32 %v1706, %v1676
        %v1708 = vadd.f32 %v1707, %v1677
        %v1709 = vadd.f32 %v1708, %v1678
        %v1710 = vadd.f32 %v1709, %v1679
        %v1711 = vadd.f32 %v1710, %v1680
        %v1712 = vadd.f32 %v1711, %v1681
        %v1713 = vadd.f32 %v1712, %v1682
        %v1714 = vadd.f32 %v1713, %v1683
        %v1715 = vadd.f32 %v1714, %v1684
        %v1716 = vadd.f32 %v1715, %v1685
        %v1717 = vadd.f32 %v1716, %v1686
        %v1718 = vadd.f32 %v1717, %v1687
        %v1719 = vadd.f32 %v1718, %v1688
        %v1720 = vrot.slane %v1719, 4
        %v1721 = vadd.f32 %v1719, %v1720
        %v1722 = vrot.slane %v1721, 2
        %v1723 = vadd.f32 %v1721, %v1722
        %v1724 = vrot.slane %v1723, 1
        %v1725 = vadd.f32 %v1723, %v1724
        %v1726 = vmul.f32 %v1725, %v803
        %1727 = vst [vmem:[#allocation2 + $0x2] sm:$0x1] %v1726
        %s1728 = scalar_lea.vmem %s331, 24
        %v1729 = vld [vmem:[%s1728] sm:$0x77]
        %v1731 = vcombine.high %v1729, %v1729
        %1733 = vxpose.xlu0.b32.start [1/16] %v1729, 128
        %1734 = vxpose.xlu0.b32.cont [2/16] 0.0, 128
        %1735 = vxpose.xlu0.b32.cont [3/16] 0.0, 128
        %1736 = vxpose.xlu0.b32.cont [4/16] 0.0, 128
        %1737 = vxpose.xlu0.b32.cont [5/16] 0.0, 128
        %1738 = vxpose.xlu0.b32.cont [6/16] 0.0, 128
        %1739 = vxpose.xlu0.b32.cont [7/16] 0.0, 128
        %1740 = vxpose.xlu0.b32.cont [8/16] 0.0, 128
        %1741 = vxpose.xlu0.b32.cont [9/16] 0.0, 128
        %1742 = vxpose.xlu0.b32.cont [10/16] 0.0, 128
        %1743 = vxpose.xlu0.b32.cont [11/16] 0.0, 128
        %1744 = vxpose.xlu0.b32.cont [12/16] 0.0, 128
        %1745 = vxpose.xlu0.b32.cont [13/16] 0.0, 128
        %1746 = vxpose.xlu0.b32.cont [14/16] 0.0, 128
        %1747 = vxpose.xlu0.b32.cont [15/16] 0.0, 128
        %1748 = vxpose.xlu0.b32.end [16/16] 0.0, 128
        %v1749 = vpop.trf.xlu0
        %v1750 = vpop.trf.xlu0
        %v1751 = vpop.trf.xlu0
        %v1752 = vpop.trf.xlu0
        %v1753 = vpop.trf.xlu0
        %v1754 = vpop.trf.xlu0
        %v1755 = vpop.trf.xlu0
        %v1756 = vpop.trf.xlu0
        %v1757 = vpop.trf.xlu0
        %v1758 = vpop.trf.xlu0
        %v1759 = vpop.trf.xlu0
        %v1760 = vpop.trf.xlu0
        %v1761 = vpop.trf.xlu0
        %v1762 = vpop.trf.xlu0
        %v1763 = vpop.trf.xlu0
        %v1764 = vpop.trf.xlu0
        %1765 = vxpose.xlu0.b32.start [1/16] %v1731, 128
        %1766 = vxpose.xlu0.b32.cont [2/16] 0.0, 128
        %1767 = vxpose.xlu0.b32.cont [3/16] 0.0, 128
        %1768 = vxpose.xlu0.b32.cont [4/16] 0.0, 128
        %1769 = vxpose.xlu0.b32.cont [5/16] 0.0, 128
        %1770 = vxpose.xlu0.b32.cont [6/16] 0.0, 128
        %1771 = vxpose.xlu0.b32.cont [7/16] 0.0, 128
        %1772 = vxpose.xlu0.b32.cont [8/16] 0.0, 128
        %1773 = vxpose.xlu0.b32.cont [9/16] 0.0, 128
        %1774 = vxpose.xlu0.b32.cont [10/16] 0.0, 128
        %1775 = vxpose.xlu0.b32.cont [11/16] 0.0, 128
        %1776 = vxpose.xlu0.b32.cont [12/16] 0.0, 128
        %1777 = vxpose.xlu0.b32.cont [13/16] 0.0, 128
        %1778 = vxpose.xlu0.b32.cont [14/16] 0.0, 128
        %1779 = vxpose.xlu0.b32.cont [15/16] 0.0, 128
        %1780 = vxpose.xlu0.b32.end [16/16] 0.0, 128
        %v1781 = vpop.trf.xlu0
        %v1782 = vpop.trf.xlu0
        %v1783 = vpop.trf.xlu0
        %v1784 = vpop.trf.xlu0
        %v1785 = vpop.trf.xlu0
        %v1786 = vpop.trf.xlu0
        %v1787 = vpop.trf.xlu0
        %v1788 = vpop.trf.xlu0
        %v1789 = vpop.trf.xlu0
        %v1790 = vpop.trf.xlu0
        %v1791 = vpop.trf.xlu0
        %v1792 = vpop.trf.xlu0
        %v1793 = vpop.trf.xlu0
        %v1794 = vpop.trf.xlu0
        %v1795 = vpop.trf.xlu0
        %v1796 = vpop.trf.xlu0
        %v1798 = vsel %vm408, %v1749, 0
        %v1801 = vsel %vm408, %v1750, 0
        %v1804 = vsel %vm408, %v1751, 0
        %v1807 = vsel %vm408, %v1752, 0
        %v1810 = vsel %vm408, %v1753, 0
        %v1813 = vsel %vm408, %v1754, 0
        %v1816 = vsel %vm408, %v1755, 0
        %v1819 = vsel %vm408, %v1756, 0
        %v1822 = vsel %vm408, %v1757, 0
        %v1825 = vsel %vm408, %v1758, 0
        %v1828 = vsel %vm408, %v1759, 0
        %v1831 = vsel %vm408, %v1760, 0
        %v1834 = vsel %vm408, %v1761, 0
        %v1837 = vsel %vm408, %v1762, 0
        %v1840 = vsel %vm408, %v1763, 0
        %v1843 = vsel %vm408, %v1764, 0
        %v1846 = vsel %vm408, %v1781, 0
        %v1849 = vsel %vm408, %v1782, 0
        %v1852 = vsel %vm408, %v1783, 0
        %v1855 = vsel %vm408, %v1784, 0
        %v1858 = vsel %vm408, %v1785, 0
        %v1861 = vsel %vm408, %v1786, 0
        %v1864 = vsel %vm408, %v1787, 0
        %v1867 = vsel %vm408, %v1788, 0
        %v1870 = vsel %vm408, %v1789, 0
        %v1873 = vsel %vm408, %v1790, 0
        %v1876 = vsel %vm408, %v1791, 0
        %v1879 = vsel %vm408, %v1792, 0
        %v1882 = vsel %vm408, %v1793, 0
        %v1885 = vsel %vm408, %v1794, 0
        %v1888 = vsel %vm408, %v1795, 0
        %v1891 = vsel %vm408, %v1796, 0
        %1893 = vmatprep.subr.mxu0 0.0
        %1894 = vmatpush1.msra.mxu0 %v507
        %1895 = vmatprep.subr.mxu0 0.0
        %1896 = vmatpush1.msra.mxu0 0.0
        %1897 = vmatprep.subr.mxu0 0.0
        %1898 = vmatpush1.msra.mxu0 0.0
        %1899 = vmatprep.subr.mxu0 0.0
        %1900 = vmatpush1.msra.mxu0 0.0
        %1901 = vmatprep.subr.mxu0 0.0
        %1902 = vmatpush1.msra.mxu0 0.0
        %1903 = vmatprep.subr.mxu0 0.0
        %1904 = vmatpush1.msra.mxu0 0.0
        %1905 = vmatprep.subr.mxu0 0.0
        %1906 = vmatpush1.msra.mxu0 0.0
        %1907 = vmatprep.subr.mxu0 0.0
        %1908 = vmatpush1.msra.mxu0 0.0
        %1909 = vmatprep.subr.mxu0 0.0
        %1910 = vmatpush1.msra.mxu0 0.0
        %1911 = vmatprep.subr.mxu0 0.0
        %1912 = vmatpush1.msra.mxu0 0.0
        %1913 = vmatprep.subr.mxu0 0.0
        %1914 = vmatpush1.msra.mxu0 0.0
        %1915 = vmatprep.subr.mxu0 0.0
        %1916 = vmatpush1.msra.mxu0 0.0
        %1917 = vmatprep.subr.mxu0 0.0
        %1918 = vmatpush1.msra.mxu0 0.0
        %1919 = vmatprep.subr.mxu0 0.0
        %1920 = vmatpush1.msra.mxu0 0.0
        %1921 = vmatprep.subr.mxu0 0.0
        %1922 = vmatpush1.msra.mxu0 0.0
        %1923 = vmatprep.subr.mxu0 0.0
        %1924 = vmatpush1.msra.mxu0 0.0
        %1925 = vmatprep.subr.mxu0 0.0
        %1926 = vmatpush1.msra.mxu0 0.0
        %1927 = vmatprep.subr.mxu0 0.0
        %1928 = vmatpush1.msra.mxu0 0.0
        %1929 = vmatprep.subr.mxu0 0.0
        %1930 = vmatpush1.msra.mxu0 0.0
        %1931 = vmatprep.subr.mxu0 0.0
        %1932 = vmatpush1.msra.mxu0 0.0
        %1933 = vmatprep.subr.mxu0 0.0
        %1934 = vmatpush1.msra.mxu0 0.0
        %1935 = vmatprep.subr.mxu0 0.0
        %1936 = vmatpush1.msra.mxu0 0.0
        %1937 = vmatprep.subr.mxu0 0.0
        %1938 = vmatpush1.msra.mxu0 0.0
        %1939 = vmatprep.subr.mxu0 0.0
        %1940 = vmatpush1.msra.mxu0 0.0
        %1941 = vmatprep.subr.mxu0 0.0
        %1942 = vmatpush1.msra.mxu0 0.0
        %1943 = vmatprep.subr.mxu0 0.0
        %1944 = vmatpush1.msra.mxu0 0.0
        %1945 = vmatprep.subr.mxu0 0.0
        %1946 = vmatpush1.msra.mxu0 0.0
        %1947 = vmatprep.subr.mxu0 0.0
        %1948 = vmatpush1.msra.mxu0 0.0
        %1949 = vmatprep.subr.mxu0 0.0
        %1950 = vmatpush1.msra.mxu0 0.0
        %1951 = vmatprep.subr.mxu0 0.0
        %1952 = vmatpush1.msra.mxu0 0.0
        %1953 = vmatprep.subr.mxu0 0.0
        %1954 = vmatpush1.msra.mxu0 0.0
        %1955 = vmatprep.subr.mxu0 0.0
        %1956 = vmatpush1.msra.mxu0 0.0
        %1957 = vmatprep.mubr.f32.mxu0 0.0
        %1958 = vmatmul.mubr.f32.gmra.mrb[0].mxu0 %v1798
        %v1959 = vpop.f32.mrb[0].mxu0
        %v1960 = vadd.f32 %v339, %v1959
        %v1961 = vpop.f32.mrb[0].mxu0
        %1962 = vmatprep.mubr.f32.mxu0 0.0
        %1963 = vmatmul.mubr.f32.gmra.mrb[0].mxu0 %v1801
        %v1964 = vpop.f32.mrb[0].mxu0
        %v1965 = vadd.f32 %v339, %v1964
        %v1966 = vpop.f32.mrb[0].mxu0
        %1967 = vmatprep.mubr.f32.mxu0 0.0
        %1968 = vmatmul.mubr.f32.gmra.mrb[0].mxu0 %v1804
        %v1969 = vpop.f32.mrb[0].mxu0
        %v1970 = vadd.f32 %v339, %v1969
        %v1971 = vpop.f32.mrb[0].mxu0
        %1972 = vmatprep.mubr.f32.mxu0 0.0
        %1973 = vmatmul.mubr.f32.gmra.mrb[0].mxu0 %v1807
        %v1974 = vpop.f32.mrb[0].mxu0
        %v1975 = vadd.f32 %v339, %v1974
        %v1976 = vpop.f32.mrb[0].mxu0
        %1977 = vmatprep.mubr.f32.mxu0 0.0
        %1978 = vmatmul.mubr.f32.gmra.mrb[0].mxu0 %v1810
        %v1979 = vpop.f32.mrb[0].mxu0
        %v1980 = vadd.f32 %v339, %v1979
        %v1981 = vpop.f32.mrb[0].mxu0
        %1982 = vmatprep.mubr.f32.mxu0 0.0
        %1983 = vmatmul.mubr.f32.gmra.mrb[0].mxu0 %v1813
        %v1984 = vpop.f32.mrb[0].mxu0
        %v1985 = vadd.f32 %v339, %v1984
        %v1986 = vpop.f32.mrb[0].mxu0
        %1987 = vmatprep.mubr.f32.mxu0 0.0
        %1988 = vmatmul.mubr.f32.gmra.mrb[0].mxu0 %v1816
        %v1989 = vpop.f32.mrb[0].mxu0
        %v1990 = vadd.f32 %v339, %v1989
        %v1991 = vpop.f32.mrb[0].mxu0
        %1992 = vmatprep.mubr.f32.mxu0 0.0
        %1993 = vmatmul.mubr.f32.gmra.mrb[0].mxu0 %v1819
        %v1994 = vpop.f32.mrb[0].mxu0
        %v1995 = vadd.f32 %v339, %v1994
        %v1996 = vpop.f32.mrb[0].mxu0
        %1997 = vmatprep.mubr.f32.mxu0 0.0
        %1998 = vmatmul.mubr.f32.gmra.mrb[0].mxu0 %v1822
        %v1999 = vpop.f32.mrb[0].mxu0
        %v2000 = vadd.f32 %v339, %v1999
        %v2001 = vpop.f32.mrb[0].mxu0
        %2002 = vmatprep.mubr.f32.mxu0 0.0
        %2003 = vmatmul.mubr.f32.gmra.mrb[0].mxu0 %v1825
        %v2004 = vpop.f32.mrb[0].mxu0
        %v2005 = vadd.f32 %v339, %v2004
        %v2006 = vpop.f32.mrb[0].mxu0
        %2007 = vmatprep.mubr.f32.mxu0 0.0
        %2008 = vmatmul.mubr.f32.gmra.mrb[0].mxu0 %v1828
        %v2009 = vpop.f32.mrb[0].mxu0
        %v2010 = vadd.f32 %v339, %v2009
        %v2011 = vpop.f32.mrb[0].mxu0
        %2012 = vmatprep.mubr.f32.mxu0 0.0
        %2013 = vmatmul.mubr.f32.gmra.mrb[0].mxu0 %v1831
        %v2014 = vpop.f32.mrb[0].mxu0
        %v2015 = vadd.f32 %v339, %v2014
        %v2016 = vpop.f32.mrb[0].mxu0
        %2017 = vmatprep.mubr.f32.mxu0 0.0
        %2018 = vmatmul.mubr.f32.gmra.mrb[0].mxu0 %v1834
        %v2019 = vpop.f32.mrb[0].mxu0
        %v2020 = vadd.f32 %v339, %v2019
        %v2021 = vpop.f32.mrb[0].mxu0
        %2022 = vmatprep.mubr.f32.mxu0 0.0
        %2023 = vmatmul.mubr.f32.gmra.mrb[0].mxu0 %v1837
        %v2024 = vpop.f32.mrb[0].mxu0
        %v2025 = vadd.f32 %v339, %v2024
        %v2026 = vpop.f32.mrb[0].mxu0
        %2027 = vmatprep.mubr.f32.mxu0 0.0
        %2028 = vmatmul.mubr.f32.gmra.mrb[0].mxu0 %v1840
        %v2029 = vpop.f32.mrb[0].mxu0
        %v2030 = vadd.f32 %v339, %v2029
        %v2031 = vpop.f32.mrb[0].mxu0
        %2032 = vmatprep.mubr.f32.mxu0 0.0
        %2033 = vmatmul.mubr.f32.gmra.mrb[0].mxu0 %v1843
        %v2034 = vpop.f32.mrb[0].mxu0
        %v2035 = vadd.f32 %v339, %v2034
        %v2036 = vpop.f32.mrb[0].mxu0
        %2037 = vmatprep.mubr.f32.mxu0 0.0
        %2038 = vmatmul.mubr.f32.gmra.mrb[0].mxu0 %v1846
        %v2039 = vpop.f32.mrb[0].mxu0
        %v2040 = vadd.f32 %v339, %v2039
        %v2041 = vpop.f32.mrb[0].mxu0
        %2042 = vmatprep.mubr.f32.mxu0 0.0
        %2043 = vmatmul.mubr.f32.gmra.mrb[0].mxu0 %v1849
        %v2044 = vpop.f32.mrb[0].mxu0
        %v2045 = vadd.f32 %v339, %v2044
        %v2046 = vpop.f32.mrb[0].mxu0
        %2047 = vmatprep.mubr.f32.mxu0 0.0
        %2048 = vmatmul.mubr.f32.gmra.mrb[0].mxu0 %v1852
        %v2049 = vpop.f32.mrb[0].mxu0
        %v2050 = vadd.f32 %v339, %v2049
        %v2051 = vpop.f32.mrb[0].mxu0
        %2052 = vmatprep.mubr.f32.mxu0 0.0
        %2053 = vmatmul.mubr.f32.gmra.mrb[0].mxu0 %v1855
        %v2054 = vpop.f32.mrb[0].mxu0
        %v2055 = vadd.f32 %v339, %v2054
        %v2056 = vpop.f32.mrb[0].mxu0
        %2057 = vmatprep.mubr.f32.mxu0 0.0
        %2058 = vmatmul.mubr.f32.gmra.mrb[0].mxu0 %v1858
        %v2059 = vpop.f32.mrb[0].mxu0
        %v2060 = vadd.f32 %v339, %v2059
        %v2061 = vpop.f32.mrb[0].mxu0
        %2062 = vmatprep.mubr.f32.mxu0 0.0
        %2063 = vmatmul.mubr.f32.gmra.mrb[0].mxu0 %v1861
        %v2064 = vpop.f32.mrb[0].mxu0
        %v2065 = vadd.f32 %v339, %v2064
        %v2066 = vpop.f32.mrb[0].mxu0
        %2067 = vmatprep.mubr.f32.mxu0 0.0
        %2068 = vmatmul.mubr.f32.gmra.mrb[0].mxu0 %v1864
        %v2069 = vpop.f32.mrb[0].mxu0
        %v2070 = vadd.f32 %v339, %v2069
        %v2071 = vpop.f32.mrb[0].mxu0
        %2072 = vmatprep.mubr.f32.mxu0 0.0
        %2073 = vmatmul.mubr.f32.gmra.mrb[0].mxu0 %v1867
        %v2074 = vpop.f32.mrb[0].mxu0
        %v2075 = vadd.f32 %v339, %v2074
        %v2076 = vpop.f32.mrb[0].mxu0
        %2077 = vmatprep.mubr.f32.mxu0 0.0
        %2078 = vmatmul.mubr.f32.gmra.mrb[0].mxu0 %v1870
        %v2079 = vpop.f32.mrb[0].mxu0
        %v2080 = vadd.f32 %v339, %v2079
        %v2081 = vpop.f32.mrb[0].mxu0
        %2082 = vmatprep.mubr.f32.mxu0 0.0
        %2083 = vmatmul.mubr.f32.gmra.mrb[0].mxu0 %v1873
        %v2084 = vpop.f32.mrb[0].mxu0
        %v2085 = vadd.f32 %v339, %v2084
        %v2086 = vpop.f32.mrb[0].mxu0
        %2087 = vmatprep.mubr.f32.mxu0 0.0
        %2088 = vmatmul.mubr.f32.gmra.mrb[0].mxu0 %v1876
        %v2089 = vpop.f32.mrb[0].mxu0
        %v2090 = vadd.f32 %v339, %v2089
        %v2091 = vpop.f32.mrb[0].mxu0
        %2092 = vmatprep.mubr.f32.mxu0 0.0
        %2093 = vmatmul.mubr.f32.gmra.mrb[0].mxu0 %v1879
        %v2094 = vpop.f32.mrb[0].mxu0
        %v2095 = vadd.f32 %v339, %v2094
        %v2096 = vpop.f32.mrb[0].mxu0
        %2097 = vmatprep.mubr.f32.mxu0 0.0
        %2098 = vmatmul.mubr.f32.gmra.mrb[0].mxu0 %v1882
        %v2099 = vpop.f32.mrb[0].mxu0
        %v2100 = vadd.f32 %v339, %v2099
        %v2101 = vpop.f32.mrb[0].mxu0
        %2102 = vmatprep.mubr.f32.mxu0 0.0
        %2103 = vmatmul.mubr.f32.gmra.mrb[0].mxu0 %v1885
        %v2104 = vpop.f32.mrb[0].mxu0
        %v2105 = vadd.f32 %v339, %v2104
        %v2106 = vpop.f32.mrb[0].mxu0
        %2107 = vmatprep.mubr.f32.mxu0 0.0
        %2108 = vmatmul.mubr.f32.gmra.mrb[0].mxu0 %v1888
        %v2109 = vpop.f32.mrb[0].mxu0
        %v2110 = vadd.f32 %v339, %v2109
        %v2111 = vpop.f32.mrb[0].mxu0
        %2112 = vmatprep.mubr.f32.mxu0 0.0
        %2113 = vmatmul.mubr.f32.gmra.mrb[0].mxu0 %v1891
        %v2114 = vpop.f32.mrb[0].mxu0
        %v2115 = vadd.f32 %v339, %v2114
        %v2116 = vpop.f32.mrb[0].mxu0
        %2117 = vdwg.mxu0
        %v2118 = vmax.f32 %v1960, 0.0
        %v2119 = vmax.f32 %v1965, 0.0
        %v2120 = vmax.f32 %v1970, 0.0
        %v2121 = vmax.f32 %v1975, 0.0
        %v2122 = vmax.f32 %v1980, 0.0
        %v2123 = vmax.f32 %v1985, 0.0
        %v2124 = vmax.f32 %v1990, 0.0
        %v2125 = vmax.f32 %v1995, 0.0
        %v2126 = vmax.f32 %v2000, 0.0
        %v2127 = vmax.f32 %v2005, 0.0
        %v2128 = vmax.f32 %v2010, 0.0
        %v2129 = vmax.f32 %v2015, 0.0
        %v2130 = vmax.f32 %v2020, 0.0
        %v2131 = vmax.f32 %v2025, 0.0
        %v2132 = vmax.f32 %v2030, 0.0
        %v2133 = vmax.f32 %v2035, 0.0
        %v2134 = vmax.f32 %v2040, 0.0
        %v2135 = vmax.f32 %v2045, 0.0
        %v2136 = vmax.f32 %v2050, 0.0
        %v2137 = vmax.f32 %v2055, 0.0
        %v2138 = vmax.f32 %v2060, 0.0
        %v2139 = vmax.f32 %v2065, 0.0
        %v2140 = vmax.f32 %v2070, 0.0
        %v2141 = vmax.f32 %v2075, 0.0
        %v2142 = vmax.f32 %v2080, 0.0
        %v2143 = vmax.f32 %v2085, 0.0
        %v2144 = vmax.f32 %v2090, 0.0
        %v2145 = vmax.f32 %v2095, 0.0
        %v2146 = vmax.f32 %v2100, 0.0
        %v2147 = vmax.f32 %v2105, 0.0
        %v2148 = vmax.f32 %v2110, 0.0
        %v2149 = vmax.f32 %v2115, 0.0
        %v2150 = vadd.f32 %v2118, %v2119
        %v2151 = vadd.f32 %v2150, %v2120
        %v2152 = vadd.f32 %v2151, %v2121
        %v2153 = vadd.f32 %v2152, %v2122
        %v2154 = vadd.f32 %v2153, %v2123
        %v2155 = vadd.f32 %v2154, %v2124
        %v2156 = vadd.f32 %v2155, %v2125
        %v2157 = vadd.f32 %v2156, %v2126
        %v2158 = vadd.f32 %v2157, %v2127
        %v2159 = vadd.f32 %v2158, %v2128
        %v2160 = vadd.f32 %v2159, %v2129
        %v2161 = vadd.f32 %v2160, %v2130
        %v2162 = vadd.f32 %v2161, %v2131
        %v2163 = vadd.f32 %v2162, %v2132
        %v2164 = vadd.f32 %v2163, %v2133
        %v2165 = vadd.f32 %v2164, %v2134
        %v2166 = vadd.f32 %v2165, %v2135
        %v2167 = vadd.f32 %v2166, %v2136
        %v2168 = vadd.f32 %v2167, %v2137
        %v2169 = vadd.f32 %v2168, %v2138
        %v2170 = vadd.f32 %v2169, %v2139
        %v2171 = vadd.f32 %v2170, %v2140
        %v2172 = vadd.f32 %v2171, %v2141
        %v2173 = vadd.f32 %v2172, %v2142
        %v2174 = vadd.f32 %v2173, %v2143
        %v2175 = vadd.f32 %v2174, %v2144
        %v2176 = vadd.f32 %v2175, %v2145
        %v2177 = vadd.f32 %v2176, %v2146
        %v2178 = vadd.f32 %v2177, %v2147
        %v2179 = vadd.f32 %v2178, %v2148
        %v2180 = vadd.f32 %v2179, %v2149
        %v2181 = vrot.slane %v2180, 4
        %v2182 = vadd.f32 %v2180, %v2181
        %v2183 = vrot.slane %v2182, 2
        %v2184 = vadd.f32 %v2182, %v2183
        %v2185 = vrot.slane %v2184, 1
        %v2186 = vadd.f32 %v2184, %v2185
        %v2187 = vmul.f32 %v2186, %v803
        %2188 = vst [vmem:[#allocation2 + $0x3] sm:$0x1] %v2187
        %v2189 = vld [vmem:[#allocation2] sm:$0xf]
        %v2190 = vld [vmem:[%s3] sm:$0xff]
        %v2191 = vld [vmem:[%s3 + $0x8] sm:$0xff]
        %v2192 = vld [vmem:[%s3 + $0x10] sm:$0xff]
        %v2193 = vld [vmem:[%s3 + $0x18] sm:$0xff]
        %v2194 = vld [vmem:[%s3 + $0x20] sm:$0xff]
        %v2195 = vld [vmem:[%s3 + $0x28] sm:$0xff]
        %v2196 = vld [vmem:[%s3 + $0x30] sm:$0xff]
        %v2197 = vld [vmem:[%s3 + $0x38] sm:$0xff]
        %v2198 = vld [vmem:[%s3 + $0x40] sm:$0xff]
        %v2199 = vld [vmem:[%s3 + $0x48] sm:$0xff]
        %v2200 = vld [vmem:[%s3 + $0x50] sm:$0xff]
        %v2201 = vld [vmem:[%s3 + $0x58] sm:$0xff]
        %v2202 = vld [vmem:[%s3 + $0x60] sm:$0xff]
        %v2203 = vld [vmem:[%s3 + $0x68] sm:$0xff]
        %v2204 = vld [vmem:[%s3 + $0x70] sm:$0xff]
        %v2205 = vld [vmem:[%s3 + $0x78] sm:$0xff]
        %v2206 = vld [vmem:[%s4] sm:$0x1]
        %v2208 = vlaneseq
        %v2209 = vshrl.u32 %v2208, 7
        %v2210 = vsub.s32 0, %v2209
        %v2211 = vrot.slane %v2206, %v2210
        %2213 = vmatprep.subr.mxu0 0.0
        %2214 = vmatpush1.msra.mxu0 %v2190
        %2215 = vmatprep.subr.mxu0 0.0
        %2216 = vmatpush1.msra.mxu0 %v2191
        %2217 = vmatprep.subr.mxu0 0.0
        %2218 = vmatpush1.msra.mxu0 %v2192
        %2219 = vmatprep.subr.mxu0 0.0
        %2220 = vmatpush1.msra.mxu0 %v2193
        %2221 = vmatprep.subr.mxu0 0.0
        %2222 = vmatpush1.msra.mxu0 %v2194
        %2223 = vmatprep.subr.mxu0 0.0
        %2224 = vmatpush1.msra.mxu0 %v2195
        %2225 = vmatprep.subr.mxu0 0.0
        %2226 = vmatpush1.msra.mxu0 %v2196
        %2227 = vmatprep.subr.mxu0 0.0
        %2228 = vmatpush1.msra.mxu0 %v2197
        %2229 = vmatprep.subr.mxu0 0.0
        %2230 = vmatpush1.msra.mxu0 %v2198
        %2231 = vmatprep.subr.mxu0 0.0
        %2232 = vmatpush1.msra.mxu0 %v2199
        %2233 = vmatprep.subr.mxu0 0.0
        %2234 = vmatpush1.msra.mxu0 %v2200
        %2235 = vmatprep.subr.mxu0 0.0
        %2236 = vmatpush1.msra.mxu0 %v2201
        %2237 = vmatprep.subr.mxu0 0.0
        %2238 = vmatpush1.msra.mxu0 %v2202
        %2239 = vmatprep.subr.mxu0 0.0
        %2240 = vmatpush1.msra.mxu0 %v2203
        %2241 = vmatprep.subr.mxu0 0.0
        %2242 = vmatpush1.msra.mxu0 %v2204
        %2243 = vmatprep.subr.mxu0 0.0
        %2244 = vmatpush1.msra.mxu0 %v2205
        %2245 = vmatprep.subr.mxu0 0.0
        %2246 = vmatpush1.msra.mxu0 0.0
        %2247 = vmatprep.subr.mxu0 0.0
        %2248 = vmatpush1.msra.mxu0 0.0
        %2249 = vmatprep.subr.mxu0 0.0
        %2250 = vmatpush1.msra.mxu0 0.0
        %2251 = vmatprep.subr.mxu0 0.0
        %2252 = vmatpush1.msra.mxu0 0.0
        %2253 = vmatprep.subr.mxu0 0.0
        %2254 = vmatpush1.msra.mxu0 0.0
        %2255 = vmatprep.subr.mxu0 0.0
        %2256 = vmatpush1.msra.mxu0 0.0
        %2257 = vmatprep.subr.mxu0 0.0
        %2258 = vmatpush1.msra.mxu0 0.0
        %2259 = vmatprep.subr.mxu0 0.0
        %2260 = vmatpush1.msra.mxu0 0.0
        %2261 = vmatprep.subr.mxu0 0.0
        %2262 = vmatpush1.msra.mxu0 0.0
        %2263 = vmatprep.subr.mxu0 0.0
        %2264 = vmatpush1.msra.mxu0 0.0
        %2265 = vmatprep.subr.mxu0 0.0
        %2266 = vmatpush1.msra.mxu0 0.0
        %2267 = vmatprep.subr.mxu0 0.0
        %2268 = vmatpush1.msra.mxu0 0.0
        %2269 = vmatprep.subr.mxu0 0.0
        %2270 = vmatpush1.msra.mxu0 0.0
        %2271 = vmatprep.subr.mxu0 0.0
        %2272 = vmatpush1.msra.mxu0 0.0
        %2273 = vmatprep.subr.mxu0 0.0
        %2274 = vmatpush1.msra.mxu0 0.0
        %2275 = vmatprep.subr.mxu0 0.0
        %2276 = vmatpush1.msra.mxu0 0.0
        %2277 = vmatprep.mubr.f32.mxu0 0.0
        %2278 = vmatmul.mubr.f32.gmra.mrb[0].mxu0 %v2189
        %v2279 = vpop.f32.mrb[0].mxu0
        %v2280 = vadd.f32 %v2211, %v2279
        %v2281 = vpop.f32.mrb[0].mxu0
        %2282 = vdwg.mxu0
        %v2283 = vtanh.pop %v2280
        %v2284 = vld [vmem:[%s5] sm:$0xff]
        %v2285 = vld [vmem:[%s5 + $0x8] sm:$0xff]
        %v2286 = vld [vmem:[%s5 + $0x10] sm:$0xff]
        %v2287 = vld [vmem:[%s5 + $0x18] sm:$0xff]
        %v2288 = vld [vmem:[%s5 + $0x20] sm:$0xff]
        %v2289 = vld [vmem:[%s5 + $0x28] sm:$0xff]
        %v2290 = vld [vmem:[%s5 + $0x30] sm:$0xff]
        %v2291 = vld [vmem:[%s5 + $0x38] sm:$0xff]
        %v2292 = vld [vmem:[#allocation3] sm:$0x1]
        %v2294 = vlaneseq
        %v2295 = vshrl.u32 %v2294, 7
        %v2296 = vsub.s32 0, %v2295
        %v2297 = vrot.slane %v2292, %v2296
        %vm2299 = vcmask 523264
        %v2301 = vsel %vm2299, %v2283, 0
        %2303 = vmatprep.subr.mxu0 0.0
        %2304 = vmatpush1.msra.mxu0 %v2284
        %2305 = vmatprep.subr.mxu0 0.0
        %2306 = vmatpush1.msra.mxu0 %v2285
        %2307 = vmatprep.subr.mxu0 0.0
        %2308 = vmatpush1.msra.mxu0 %v2286
        %2309 = vmatprep.subr.mxu0 0.0
        %2310 = vmatpush1.msra.mxu0 %v2287
        %2311 = vmatprep.subr.mxu0 0.0
        %2312 = vmatpush1.msra.mxu0 %v2288
        %2313 = vmatprep.subr.mxu0 0.0
        %2314 = vmatpush1.msra.mxu0 %v2289
        %2315 = vmatprep.subr.mxu0 0.0
        %2316 = vmatpush1.msra.mxu0 %v2290
        %2317 = vmatprep.subr.mxu0 0.0
        %2318 = vmatpush1.msra.mxu0 %v2291
        %2319 = vmatprep.subr.mxu0 0.0
        %2320 = vmatpush1.msra.mxu0 0.0
        %2321 = vmatprep.subr.mxu0 0.0
        %2322 = vmatpush1.msra.mxu0 0.0
        %2323 = vmatprep.subr.mxu0 0.0
        %2324 = vmatpush1.msra.mxu0 0.0
        %2325 = vmatprep.subr.mxu0 0.0
        %2326 = vmatpush1.msra.mxu0 0.0
        %2327 = vmatprep.subr.mxu0 0.0
        %2328 = vmatpush1.msra.mxu0 0.0
        %2329 = vmatprep.subr.mxu0 0.0
        %2330 = vmatpush1.msra.mxu0 0.0
        %2331 = vmatprep.subr.mxu0 0.0
        %2332 = vmatpush1.msra.mxu0 0.0
        %2333 = vmatprep.subr.mxu0 0.0
        %2334 = vmatpush1.msra.mxu0 0.0
        %2335 = vmatprep.subr.mxu0 0.0
        %2336 = vmatpush1.msra.mxu0 0.0
        %2337 = vmatprep.subr.mxu0 0.0
        %2338 = vmatpush1.msra.mxu0 0.0
        %2339 = vmatprep.subr.mxu0 0.0
        %2340 = vmatpush1.msra.mxu0 0.0
        %2341 = vmatprep.subr.mxu0 0.0
        %2342 = vmatpush1.msra.mxu0 0.0
        %2343 = vmatprep.subr.mxu0 0.0
        %2344 = vmatpush1.msra.mxu0 0.0
        %2345 = vmatprep.subr.mxu0 0.0
        %2346 = vmatpush1.msra.mxu0 0.0
        %2347 = vmatprep.subr.mxu0 0.0
        %2348 = vmatpush1.msra.mxu0 0.0
        %2349 = vmatprep.subr.mxu0 0.0
        %2350 = vmatpush1.msra.mxu0 0.0
        %2351 = vmatprep.subr.mxu0 0.0
        %2352 = vmatpush1.msra.mxu0 0.0
        %2353 = vmatprep.subr.mxu0 0.0
        %2354 = vmatpush1.msra.mxu0 0.0
        %2355 = vmatprep.subr.mxu0 0.0
        %2356 = vmatpush1.msra.mxu0 0.0
        %2357 = vmatprep.subr.mxu0 0.0
        %2358 = vmatpush1.msra.mxu0 0.0
        %2359 = vmatprep.subr.mxu0 0.0
        %2360 = vmatpush1.msra.mxu0 0.0
        %2361 = vmatprep.subr.mxu0 0.0
        %2362 = vmatpush1.msra.mxu0 0.0
        %2363 = vmatprep.subr.mxu0 0.0
        %2364 = vmatpush1.msra.mxu0 0.0
        %2365 = vmatprep.subr.mxu0 0.0
        %2366 = vmatpush1.msra.mxu0 0.0
        %2367 = vmatprep.mubr.f32.mxu0 0.0
        %2368 = vmatmul.mubr.f32.gmra.mrb[0].mxu0 %v2301
        %v2369 = vpop.f32.mrb[0].mxu0
        %v2370 = vadd.f32 %v2297, %v2369
        %v2371 = vpop.f32.mrb[0].mxu0
        %2372 = vdwg.mxu0
        %vm2373 = vcmask 3072
        %v2374 = vsel %vm2373, %v2370, -inf
        %v2375 = vrot.slane %v2374, 4
        %v2376 = vmax.f32 %v2374, %v2375
        %v2377 = vrot.slane %v2376, 2
        %v2378 = vmax.f32 %v2376, %v2377
        %v2379 = vrot.slane %v2378, 1
        %v2380 = vmax.f32 %v2378, %v2379
        %v2381 = vsub.f32 %v2370, %v2380
        %v2382 = vmul.f32 %v2381, 1.442695
        %v2383 = vpow.pop %v2382
        %v2384 = vsel %vm2373, %v2383, 0.0
        %v2385 = vrot.slane %v2384, 4
        %v2386 = vadd.f32 %v2384, %v2385
        %v2387 = vrot.slane %v2386, 2
        %v2388 = vadd.f32 %v2386, %v2387
        %v2389 = vrot.slane %v2388, 1
        %v2390 = vadd.f32 %v2388, %v2389
        %v2391 = vrcp.pop %v2390
        %v2392 = vmul.f32 %v2383, %v2391
        %2394 = vset.pattern.permute.xlu0 0
        %2395 = vperm.xlu0 %2394, %v2392
        %v2396 = vpop.permute.xlu0 %2395
        %v2398 = vmul.f32 %v2396, %v2189
        %vm2399 = vcmask 1043456
        %v2400 = vsel %vm2399, %v2398, 0.0
        %v2401 = vrot.slane %v2400, 4
        %v2402 = vadd.f32 %v2400, %v2401
        %v2403 = vrot.slane %v2402, 2
        %v2404 = vadd.f32 %v2402, %v2403
        %v2405 = vrot.slane %v2404, 1
        %v2406 = vadd.f32 %v2404, %v2405
        %v2407 = vsel %vm2399, %v2189, -inf
        %v2408 = vrot.slane %v2407, 4
        %v2409 = vmax.f32 %v2407, %v2408
        %v2410 = vrot.slane %v2409, 2
        %v2411 = vmax.f32 %v2409, %v2410
        %v2412 = vrot.slane %v2411, 1
        %v2413 = vmax.f32 %v2411, %v2412
        %v2414 = vld [vmem:[%s7] sm:$0xff]
        %v2415 = vld [vmem:[%s7 + $0x8] sm:$0xff]
        %v2416 = vld [vmem:[%s7 + $0x10] sm:$0xff]
        %v2417 = vld [vmem:[%s7 + $0x18] sm:$0xff]
        %v2418 = vld [vmem:[%s7 + $0x20] sm:$0xff]
        %v2419 = vld [vmem:[%s7 + $0x28] sm:$0xff]
        %v2420 = vld [vmem:[%s7 + $0x30] sm:$0xff]
        %v2421 = vld [vmem:[%s7 + $0x38] sm:$0xff]
        %v2422 = vld [vmem:[%s7 + $0x40] sm:$0xff]
        %v2423 = vld [vmem:[%s7 + $0x48] sm:$0xff]
        %v2424 = vld [vmem:[%s7 + $0x50] sm:$0xff]
        %v2425 = vld [vmem:[%s7 + $0x58] sm:$0xff]
        %v2426 = vld [vmem:[%s7 + $0x60] sm:$0xff]
        %v2427 = vld [vmem:[%s7 + $0x68] sm:$0xff]
        %v2428 = vld [vmem:[%s7 + $0x70] sm:$0xff]
        %v2429 = vld [vmem:[%s7 + $0x78] sm:$0xff]
        %v2430 = vld [vmem:[%s7 + $0x80] sm:$0xff]
        %v2431 = vld [vmem:[%s7 + $0x88] sm:$0xff]
        %v2432 = vld [vmem:[%s7 + $0x90] sm:$0xff]
        %v2433 = vld [vmem:[%s7 + $0x98] sm:$0xff]
        %v2434 = vld [vmem:[%s7 + $0xa0] sm:$0xff]
        %v2435 = vld [vmem:[%s7 + $0xa8] sm:$0xff]
        %v2436 = vld [vmem:[%s7 + $0xb0] sm:$0xff]
        %v2437 = vld [vmem:[%s7 + $0xb8] sm:$0xff]
        %v2438 = vld [vmem:[%s7 + $0xc0] sm:$0xff]
        %v2439 = vld [vmem:[%s7 + $0xc8] sm:$0xff]
        %v2440 = vld [vmem:[%s7 + $0xd0] sm:$0xff]
        %v2441 = vld [vmem:[%s7 + $0xd8] sm:$0xff]
        %v2442 = vld [vmem:[%s7 + $0xe0] sm:$0xff]
        %v2443 = vld [vmem:[%s7 + $0xe8] sm:$0xff]
        %v2444 = vld [vmem:[%s7 + $0xf0] sm:$0xff]
        %v2445 = vld [vmem:[%s7 + $0xf8] sm:$0xff]
        %v2446 = vld [vmem:[%s8] sm:$0x1]
        %2447 = vmatprep.subr.mxu0 0.0
        %2448 = vmatpush1.msra.mxu0 %v2414
        %2449 = vmatprep.subr.mxu0 0.0
        %2450 = vmatpush1.msra.mxu0 %v2415
        %2451 = vmatprep.subr.mxu0 0.0
        %2452 = vmatpush1.msra.mxu0 %v2416
        %2453 = vmatprep.subr.mxu0 0.0
        %2454 = vmatpush1.msra.mxu0 %v2417
        %2455 = vmatprep.subr.mxu0 0.0
        %2456 = vmatpush1.msra.mxu0 %v2418
        %2457 = vmatprep.subr.mxu0 0.0
        %2458 = vmatpush1.msra.mxu0 %v2419
        %2459 = vmatprep.subr.mxu0 0.0
        %2460 = vmatpush1.msra.mxu0 %v2420
        %2461 = vmatprep.subr.mxu0 0.0
        %2462 = vmatpush1.msra.mxu0 %v2421
        %2463 = vmatprep.subr.mxu0 0.0
        %2464 = vmatpush1.msra.mxu0 %v2422
        %2465 = vmatprep.subr.mxu0 0.0
        %2466 = vmatpush1.msra.mxu0 %v2423
        %2467 = vmatprep.subr.mxu0 0.0
        %2468 = vmatpush1.msra.mxu0 %v2424
        %2469 = vmatprep.subr.mxu0 0.0
        %2470 = vmatpush1.msra.mxu0 %v2425
        %2471 = vmatprep.subr.mxu0 0.0
        %2472 = vmatpush1.msra.mxu0 %v2426
        %2473 = vmatprep.subr.mxu0 0.0
        %2474 = vmatpush1.msra.mxu0 %v2427
        %2475 = vmatprep.subr.mxu0 0.0
        %2476 = vmatpush1.msra.mxu0 %v2428
        %2477 = vmatprep.subr.mxu0 0.0
        %2478 = vmatpush1.msra.mxu0 %v2429
        %2479 = vmatprep.subr.mxu0 0.0
        %2480 = vmatpush1.msra.mxu0 %v2430
        %2481 = vmatprep.subr.mxu0 0.0
        %2482 = vmatpush1.msra.mxu0 %v2431
        %2483 = vmatprep.subr.mxu0 0.0
        %2484 = vmatpush1.msra.mxu0 %v2432
        %2485 = vmatprep.subr.mxu0 0.0
        %2486 = vmatpush1.msra.mxu0 %v2433
        %2487 = vmatprep.subr.mxu0 0.0
        %2488 = vmatpush1.msra.mxu0 %v2434
        %2489 = vmatprep.subr.mxu0 0.0
        %2490 = vmatpush1.msra.mxu0 %v2435
        %2491 = vmatprep.subr.mxu0 0.0
        %2492 = vmatpush1.msra.mxu0 %v2436
        %2493 = vmatprep.subr.mxu0 0.0
        %2494 = vmatpush1.msra.mxu0 %v2437
        %2495 = vmatprep.subr.mxu0 0.0
        %2496 = vmatpush1.msra.mxu0 %v2438
        %2497 = vmatprep.subr.mxu0 0.0
        %2498 = vmatpush1.msra.mxu0 %v2439
        %2499 = vmatprep.subr.mxu0 0.0
        %2500 = vmatpush1.msra.mxu0 %v2440
        %2501 = vmatprep.subr.mxu0 0.0
        %2502 = vmatpush1.msra.mxu0 %v2441
        %2503 = vmatprep.subr.mxu0 0.0
        %2504 = vmatpush1.msra.mxu0 %v2442
        %2505 = vmatprep.subr.mxu0 0.0
        %2506 = vmatpush1.msra.mxu0 %v2443
        %2507 = vmatprep.subr.mxu0 0.0
        %2508 = vmatpush1.msra.mxu0 %v2444
        %2509 = vmatprep.subr.mxu0 0.0
        %2510 = vmatpush1.msra.mxu0 %v2445
        %2511 = vmatprep.mubr.f32.mxu0 %v2413
        %2512 = vmatmul.mubr.f32.gmra.mrb[0].mxu0 %v2406
        %v2513 = vpop.f32.mrb[0].mxu0
        %v2514 = vadd.f32 %v2446, %v2513
        %v2515 = vpop.f32.mrb[0].mxu0
        %2516 = vdwg.mxu0
        %v2517 = vlaneseq
        %v2518 = vand.u32 %v2517, 127
        %v2519 = vxor.u32 %v2514, 2147483648
        %v2520 = vmul.f32 %v2519, 1.442695
        %v2521 = vpow.pop %v2520
        %v2522 = vadd.f32 %v2521, 1.0
        %v2523 = vrcp.pop %v2522
        %v2524 = vmul.f32 1.0, %v2523
        %v2525 = vmul.f32 %v2524, 7.0
        %v2526 = vsub.f32 %v2525, 1.0
        %vm2527 = vcmp.eq.s32.totalorder %v2518, 0
        %v2528 = vsel %vm2527, %v2526, %v2514
        %v2529 = vlaneseq
        %v2530 = vshrl.u32 %v2529, 7
        %v2531 = vadd.s32 %v2530, 8
        %vm2532 = vcmp.eq.s32.totalorder %v2518, %v2531
        %v2533 = vsel %vm2532, 1, 0
        %v2534 = vcvt.s32.f32 %v2533
        %v2535 = vmul.f32 %v2396, %v2534
        %v2536 = vsel %vm2399, %v2535, 0.0
        %v2537 = vrot.slane %v2536, 4
        %v2538 = vadd.f32 %v2536, %v2537
        %v2539 = vrot.slane %v2538, 2
        %v2540 = vadd.f32 %v2538, %v2539
        %v2541 = vrot.slane %v2540, 1
        %v2542 = vadd.f32 %v2540, %v2541
        %v2543 = vadd.f32 %v2528, %v2542
        %2544 = vst [vmem:[%s326] sm:$0x1] %v2543
        %s2545 = sand.u32 %s227, 1
        %s2546 = scalar_lea.sflag [#allocation5], %s2545
        %s2547 = sand.u32 %s227, 1
        %s2548 = scalar_lea.vmem [#allocation4], %s2547
        // Predicated region
        $region57: #{tpu_custom_call.1} parent=55 // pred_check
          %p2549 = pneg %p237
        $region58: #{tpu_custom_call.1} parent=55 // pred_check_branch
          %2551 = sbr.rel (%p2549) target = $region60
        $region59: #{tpu_custom_call.1} parent=55 // pred_region
          %s2553 = ssub.s32 16, 16
          %2554 = vsyncadd %s2546, %s2553
          %s2555 = smul.addr %s25, 16
          %s2556 = scalar_lea.hbm %s9, %s2555
          %s2558 = sshll.u32 %s2548, 4
          %s2559 = int_to_ptr.vmem [resolvable:$true] %s2558
          %2561 = dma.vmem_to_hbm [thread:$0]  %s2559, 16, %s2556, %s2546
        $region60: #{tpu_custom_call.1} parent=55 // pred_fallthru
          _
      $region56: #{tpu_custom_call.1} parent=5 // pred_fallthru
        _
      %p2562 = scmp.le.s32.totalorder 2, %s20
      // Predicated region
      $region61: #{tpu_custom_call.1} parent=5 // pred_check
        %p2563 = pneg %p2562
      $region62: #{tpu_custom_call.1} parent=5 // pred_check_branch
        %2565 = sbr.rel (%p2563) target = $region64
      $region63: #{tpu_custom_call.1} parent=5 // pred_region
        %s2566 = ssub.s32 %s20, 2
        // Predicated region
        $region65: #{tpu_custom_call.1} parent=63 // pred_check
          %p2567 = pneg %p243
        $region66: #{tpu_custom_call.1} parent=63 // pred_check_branch
          %2569 = sbr.rel (%p2567) target = $region68
        $region67: #{tpu_custom_call.1} parent=63 // pred_region
          %s2570 = sand.u32 %s228, 1
          %s2571 = scalar_lea.sflag [#allocation5], %s2570
          %s2572 = sand.u32 %s228, 1
          %s2573 = scalar_lea.vmem [#allocation4], %s2572
          %2574 = dma.done %s2571, 16
        $region68: #{tpu_custom_call.1} parent=63 // pred_fallthru
          _
      $region64: #{tpu_custom_call.1} parent=5 // pred_fallthru
        _
    $region6: #{tpu_custom_call.1} parent=1 // loop_footer
      %s24 = sadd.s32 1, %s20
    $region7: #{tpu_custom_call.1} parent=1 // loop_footer_branch
      %19 = sbr.rel target = $region3
    $region8: #{tpu_custom_call.1} parent=1 // loop_exit
      _
    %2575 = vsyncpa [#allocation5], 1
    %s2576 = scalar_lea.sflag [#allocation5], 1
    %2577 = vsyncpa %s2576, 1

</llo_original>
